<compile_context>
chip_gen: v7x
topology: tpu7x:2x2x1
jax: 0.10.0
libtpu: 0.0.40
codegen_flags: <defaults>
</compile_context>

<pallas_src>
import jax
import jax.numpy as jnp
from jax.experimental import pallas as pl
from jax.experimental.pallas import tpu as pltpu


def _vmem_limit_bytes():
    """Generation-aware scoped-VMEM limit (v4/v5/v6: 128 MiB physical; v7x: 64 MiB)."""
    try:
        kind = jax.devices()[0].device_kind.lower()
    except Exception:
        kind = ""
    if any(v in kind for v in ("v4", "v5", "v6")):
        return 96 * 1024 * 1024
    if "7" in kind:
        return 40 * 1024 * 1024
    return 32 * 1024 * 1024          # unknown generation: keep the safe default


def _pick_lane_tile(num_edges, n2_pad, hidden):
    """Pick the lane width C of the (8, C) per-step edge block.

    Largest C whose double-buffered working set fits a conservative (v7x-safe)
    budget, then shrunk so there are >= 2 grid steps when the edge count allows
    it (keeps the parallel grid axis able to feed both v7x TensorCores)."""
    rows = 8                                    # full sublane tile per step
    budget = 20 * 1024 * 1024
    resident = hidden * n2_pad * 4              # projected node table (f32)
    lane = 128
    for cand in (256, 512, 1024, 2048, 4096):
        work = (resident
                + 2 * 2 * rows * cand * 4              # src/dst idx blocks, dbl-buffered
                + 2 * rows * cand * 4                  # output block, dbl-buffered
                + (n2_pad + 2 * hidden) * cand * 4)    # one-hot + hidden intermediates
        if work <= budget:
            lane = cand
    while lane > 128 and -(-num_edges // (rows * lane)) < 2:
        lane //= 2
    return rows, lane


def mlp_edge_kernel(tab_ref, src_ref, dst_ref, b1_ref, w2_ref, b2_ref, o_ref):
    # tab_ref: (H, N2P)  resident projected node table [W1a@h.T | W1b@h.T] (padded)
    # src_ref: (8, C)    int32 src node ids   (combined index space [0, N))
    # dst_ref: (8, C)    int32 dst node ids+N (combined index space [N, 2N))
    # b1_ref : (H, 1)
    # w2_ref : (H, 1)    W2 as a column
    # b2_ref : (1,)      SMEM scalar
    # o_ref  : (8, C)    lane-dense edge scores
    tab = tab_ref[...]                                       # hoisted loads
    b1 = b1_ref[...]
    w2 = w2_ref[...]
    b2 = b2_ref[0]
    n2p = tab.shape[1]
    c = src_ref.shape[1]
    iota = jax.lax.broadcasted_iota(jnp.int32, (n2p, c), 0)  # hoisted (no per-row re-broadcast)

    for r in range(src_ref.shape[0]):                        # 8 sublane rows, unrolled
        s = src_ref[r:r + 1, :]                              # (1, C)
        d = dst_ref[r:r + 1, :]                              # (1, C)
        # Exact one-hot selector over the combined (src | dst+N) index space.
        onehot = ((iota == s) | (iota == d)).astype(jnp.float32)       # (N2P, C)
        # Single MXU issue per row: gathers and sums the two table columns.
        z = jnp.dot(tab, onehot, preferred_element_type=jnp.float32) + b1   # (H, C)
        a = jnp.maximum(z, 0.0)                              # ReLU on the VPU
        # H -> 1 projection: VPU multiply + sublane reduce (no 1-column MXU dot).
        o_ref[r:r + 1, :] = jnp.sum(a * w2, axis=0, keepdims=True) + b2


def mlp_predictor_scores(tab, src_c, dst_c, b1_col, w2_col, b2, *, rows, lane):
    """tab: (H, N2P) resident projected node table; src_c/dst_c: (R, lane) int32
    combined node indices.  Returns (R*lane,) f32 edge scores."""
    h_hidden, n2p = tab.shape
    total_rows = src_c.shape[0]
    assert total_rows % rows == 0 and src_c.shape[1] == lane
    steps = total_rows // rows

    out = pl.pallas_call(
        mlp_edge_kernel,
        out_shape=jax.ShapeDtypeStruct((total_rows, lane), jnp.float32),
        grid_spec=pltpu.PrefetchScalarGridSpec(
            num_scalar_prefetch=0,
            grid=(steps,),
            in_specs=[
                pl.BlockSpec((h_hidden, n2p), lambda i: (0, 0)),      # table (resident)
                pl.BlockSpec((rows, lane), lambda i: (i, 0)),         # src ids
                pl.BlockSpec((rows, lane), lambda i: (i, 0)),         # dst ids (+N)
                pl.BlockSpec((h_hidden, 1), lambda i: (0, 0)),        # b1
                pl.BlockSpec((h_hidden, 1), lambda i: (0, 0)),        # W2 column
                pl.BlockSpec(memory_space=pltpu.MemorySpace.SMEM),    # b2 scalar
            ],
            out_specs=pl.BlockSpec((rows, lane), lambda i: (i, 0)),   # full (8,C) tiles
        ),
        compiler_params=pltpu.CompilerParams(
            dimension_semantics=("parallel",),        # megacore / v7x 2-TC split
            vmem_limit_bytes=_vmem_limit_bytes(),
        ),
    )(tab, src_c, dst_c, b1_col, w2_col, b2)
    return out.reshape(-1)


def mlp_predictor_forward(h, src_idx, dst_idx, params):
    """Full forward pass: scores for edges (src_idx[i], dst_idx[i])."""
    w1, b1, w2, b2 = params          # torch layouts: (H, 2D), (H,), (1, H), (1,)
    n, d = h.shape
    e = src_idx.shape[0]
    h_hidden = w1.shape[0]

    # Projected node table T = [W1a @ h.T | W1b @ h.T], shape (H, 2N).  This is
    # a tiny one-off XLA matmul; the kernel then never touches h again.
    h_t = h.T                                              # (D, N)
    tab = jnp.concatenate([w1[:, :d] @ h_t, w1[:, d:] @ h_t], axis=1)   # (H, 2N)
    n2 = 2 * n
    n2_pad = ((n2 + 127) // 128) * 128                     # lane-align the table
    tab = jnp.pad(tab, ((0, 0), (0, n2_pad - n2)))         # padded cols never selected

    rows, lane = _pick_lane_tile(e, n2_pad, h_hidden)
    per_step = rows * lane
    steps = -(-e // per_step)
    e_pad = steps * per_step

    # Combined index space: src in [0, N), dst+N in [N, 2N).  Padded edges map
    # to node 0 / node N -> garbage scores that are sliced off below.
    src_c = jnp.pad(src_idx.astype(jnp.int32), (0, e_pad - e)).reshape(steps * rows, lane)
    dst_c = (jnp.pad(dst_idx.astype(jnp.int32), (0, e_pad - e)) + n).reshape(steps * rows, lane)

    b1_col = b1.reshape(-1, 1)                             # (H, 1)
    w2_col = w2.reshape(-1, 1)                             # (H, 1)
    b2_s = b2.reshape(1)                                   # (1,) SMEM scalar

    scores = mlp_predictor_scores(tab, src_c, dst_c, b1_col, w2_col, b2_s,
                                  rows=rows, lane=lane)
    return scores[:e]


def init_params(key, input_size, hidden_size):
    """nn.Linear-style init, torch weight layouts: W1 (H, 2D), W2 (1, H)."""
    k1, k2, k3, k4 = jax.random.split(key, 4)
    lim1 = 1.0 / jnp.sqrt(input_size)
    lim2 = 1.0 / jnp.sqrt(hidden_size)
    w1 = jax.random.uniform(k1, (hidden_size, input_size), jnp.float32, -lim1, lim1)
    b1 = jax.random.uniform(k2, (hidden_size,), jnp.float32, -lim1, lim1)
    w2 = jax.random.uniform(k3, (1, hidden_size), jnp.float32, -lim2, lim2)
    b2 = jax.random.uniform(k4, (1,), jnp.float32, -lim2, lim2)
    return w1, b1, w2, b2


if __name__ == "__main__":
    key = jax.random.PRNGKey(0)
    kh, ks, kd, kp = jax.random.split(key, 4)

    N = 64            # nodes
    D = 16            # node embedding dim
    E = 2000          # edges (deliberately NOT a multiple of the tile)
    input_size = 2 * D
    hidden_size = 32

    h = jax.random.normal(kh, (N, D), jnp.float32)
    src_idx = jax.random.randint(ks, (E,), 0, N)
    dst_idx = jax.random.randint(kd, (E,), 0, N)
    params = init_params(kp, input_size, hidden_size)

    scores = mlp_predictor_forward(h, src_idx, dst_idx, params)
    jax.block_until_ready(scores)

    # pure-JAX reference (same math as the PyTorch module forward)
    w1, b1, w2, b2 = params
    x = jnp.concatenate([h[src_idx], h[dst_idx]], axis=1)        # (E, 2D)
    hidden = jnp.maximum(x @ w1.T + b1, 0.0)                     # (E, H)
    ref = jnp.sum(hidden * w2[0], axis=-1) + b2[0]               # (E,)

    assert scores.shape == (E,)
    assert jnp.allclose(scores, ref, atol=1e-4, rtol=1e-4)

    print("KERNEL_OK")
</pallas_src>

<mosaic_0001>
module attributes {stable_mosaic.version = 11 : i64} {
  func.func @mlp_edge_kernel(%arg0: i32, %arg1: memref<32x128xf32, #tpu.memory_space<vmem>>, %arg2: memref<8x128xi32, #tpu.memory_space<vmem>>, %arg3: memref<8x128xi32, #tpu.memory_space<vmem>>, %arg4: memref<32x1xf32, #tpu.memory_space<vmem>>, %arg5: memref<32x1xf32, #tpu.memory_space<vmem>>, %arg6: memref<1xf32, #tpu.memory_space<smem>>, %arg7: memref<8x128xf32, #tpu.memory_space<vmem>>) attributes {dimension_semantics = [#tpu.dimension_semantics<parallel>], iteration_bounds = array<i64: 2>, scalar_prefetch = 0 : i64, scratch_operands = 0 : i64, tpu.core_type = #tpu.core_type<tc>, window_params = [{pipeline_mode = #tpu.pipeline_mode<synchronous>, transform_indices = @transform_0, window_bounds = array<i64: 32, 128>}, {transform_indices = @transform_1, window_bounds = array<i64: 8, 128>}, {transform_indices = @transform_2, window_bounds = array<i64: 8, 128>}, {pipeline_mode = #tpu.pipeline_mode<synchronous>, transform_indices = @transform_3, window_bounds = array<i64: 32, 1>}, {pipeline_mode = #tpu.pipeline_mode<synchronous>, transform_indices = @transform_4, window_bounds = array<i64: 32, 1>}, {transform_indices = @transform_5, window_bounds = array<i64: 1>}, {transform_indices = @transform_6, window_bounds = array<i64: 8, 128>}]} {
    %c0 = arith.constant 0 : index
    %c0_0 = arith.constant 0 : index
    %0 = vector.load %arg1[%c0, %c0_0] : memref<32x128xf32, #tpu.memory_space<vmem>>, vector<32x128xf32>
    %c0_1 = arith.constant 0 : index
    %c0_2 = arith.constant 0 : index
    %1 = vector.load %arg4[%c0_1, %c0_2] : memref<32x1xf32, #tpu.memory_space<vmem>>, vector<32x1xf32>
    %c0_3 = arith.constant 0 : index
    %c0_4 = arith.constant 0 : index
    %2 = vector.load %arg5[%c0_3, %c0_4] : memref<32x1xf32, #tpu.memory_space<vmem>>, vector<32x1xf32>
    %c0_5 = arith.constant 0 : index
    %3 = memref.load %arg6[%c0_5] : memref<1xf32, #tpu.memory_space<smem>>
    %4 = tpu.iota {dimensions = array<i32: 0>} : vector<128x128xi32>
    %c0_6 = arith.constant 0 : index
    %c0_7 = arith.constant 0 : index
    %5 = vector.load %arg2[%c0_6, %c0_7] : memref<8x128xi32, #tpu.memory_space<vmem>>, vector<1x128xi32>
    %c0_8 = arith.constant 0 : index
    %c0_9 = arith.constant 0 : index
    %6 = vector.load %arg3[%c0_8, %c0_9] : memref<8x128xi32, #tpu.memory_space<vmem>>, vector<1x128xi32>
    %7 = vector.broadcast %5 : vector<1x128xi32> to vector<128x128xi32>
    %8 = arith.cmpi eq, %4, %7 : vector<128x128xi32>
    %9 = vector.broadcast %6 : vector<1x128xi32> to vector<128x128xi32>
    %10 = arith.cmpi eq, %4, %9 : vector<128x128xi32>
    %11 = arith.ori %8, %10 : vector<128x128xi1>
    %12 = arith.extui %11 : vector<128x128xi1> to vector<128x128xi32>
    %13 = arith.sitofp %12 : vector<128x128xi32> to vector<128x128xf32>
    %cst = arith.constant dense<0.000000e+00> : vector<32x128xf32>
    %14 = tpu.matmul %0, %13, %cst {dimension_numbers = #tpu.dot_dimension_numbers<[1], [0], [0], [1], [0, 0, 1, 1], [], []>} : vector<32x128xf32>, vector<128x128xf32>, vector<32x128xf32> -> vector<32x128xf32>
    %15 = vector.broadcast %1 : vector<32x1xf32> to vector<32x128xf32>
    %16 = arith.addf %14, %15 : vector<32x128xf32>
    %cst_10 = arith.constant 0.000000e+00 : f32
    %17 = vector.broadcast %cst_10 : f32 to vector<32x128xf32>
    %18 = arith.maximumf %16, %17 : vector<32x128xf32>
    %19 = vector.broadcast %2 : vector<32x1xf32> to vector<32x128xf32>
    %20 = arith.mulf %18, %19 : vector<32x128xf32>
    %cst_11 = arith.constant dense<0.000000e+00> : vector<128xf32>
    %21 = vector.multi_reduction <add>, %20, %cst_11 [0] : vector<32x128xf32> to vector<128xf32>
    %22 = vector.shape_cast %21 : vector<128xf32> to vector<1x128xf32>
    %23 = vector.broadcast %3 : f32 to vector<1x128xf32>
    %24 = arith.addf %22, %23 : vector<1x128xf32>
    %c0_12 = arith.constant 0 : index
    %c0_13 = arith.constant 0 : index
    %25 = vector.load %arg7[%c0_12, %c0_13] : memref<8x128xf32, #tpu.memory_space<vmem>>, vector<1x128xf32>
    tpu.vector_store %arg7[%c0_12, %c0_13], %24 {strides = array<i32>} : memref<8x128xf32, #tpu.memory_space<vmem>>, vector<1x128xf32>,
    %c1 = arith.constant 1 : index
    %c0_14 = arith.constant 0 : index
    %26 = vector.load %arg2[%c1, %c0_14] : memref<8x128xi32, #tpu.memory_space<vmem>>, vector<1x128xi32>
    %c1_15 = arith.constant 1 : index
    %c0_16 = arith.constant 0 : index
    %27 = vector.load %arg3[%c1_15, %c0_16] : memref<8x128xi32, #tpu.memory_space<vmem>>, vector<1x128xi32>
    %28 = vector.broadcast %26 : vector<1x128xi32> to vector<128x128xi32>
    %29 = arith.cmpi eq, %4, %28 : vector<128x128xi32>
    %30 = vector.broadcast %27 : vector<1x128xi32> to vector<128x128xi32>
    %31 = arith.cmpi eq, %4, %30 : vector<128x128xi32>
    %32 = arith.ori %29, %31 : vector<128x128xi1>
    %33 = arith.extui %32 : vector<128x128xi1> to vector<128x128xi32>
    %34 = arith.sitofp %33 : vector<128x128xi32> to vector<128x128xf32>
    %cst_17 = arith.constant dense<0.000000e+00> : vector<32x128xf32>
    %35 = tpu.matmul %0, %34, %cst_17 {dimension_numbers = #tpu.dot_dimension_numbers<[1], [0], [0], [1], [0, 0, 1, 1], [], []>} : vector<32x128xf32>, vector<128x128xf32>, vector<32x128xf32> -> vector<32x128xf32>
    %36 = vector.broadcast %1 : vector<32x1xf32> to vector<32x128xf32>
    %37 = arith.addf %35, %36 : vector<32x128xf32>
    %cst_18 = arith.constant 0.000000e+00 : f32
    %38 = vector.broadcast %cst_18 : f32 to vector<32x128xf32>
    %39 = arith.maximumf %37, %38 : vector<32x128xf32>
    %40 = vector.broadcast %2 : vector<32x1xf32> to vector<32x128xf32>
    %41 = arith.mulf %39, %40 : vector<32x128xf32>
    %cst_19 = arith.constant dense<0.000000e+00> : vector<128xf32>
    %42 = vector.multi_reduction <add>, %41, %cst_19 [0] : vector<32x128xf32> to vector<128xf32>
    %43 = vector.shape_cast %42 : vector<128xf32> to vector<1x128xf32>
    %44 = vector.broadcast %3 : f32 to vector<1x128xf32>
    %45 = arith.addf %43, %44 : vector<1x128xf32>
    %c1_20 = arith.constant 1 : index
    %c0_21 = arith.constant 0 : index
    %46 = vector.load %arg7[%c1_20, %c0_21] : memref<8x128xf32, #tpu.memory_space<vmem>>, vector<1x128xf32>
    tpu.vector_store %arg7[%c1_20, %c0_21], %45 {strides = array<i32>} : memref<8x128xf32, #tpu.memory_space<vmem>>, vector<1x128xf32>,
    %c2 = arith.constant 2 : index
    %c0_22 = arith.constant 0 : index
    %47 = vector.load %arg2[%c2, %c0_22] : memref<8x128xi32, #tpu.memory_space<vmem>>, vector<1x128xi32>
    %c2_23 = arith.constant 2 : index
    %c0_24 = arith.constant 0 : index
    %48 = vector.load %arg3[%c2_23, %c0_24] : memref<8x128xi32, #tpu.memory_space<vmem>>, vector<1x128xi32>
    %49 = vector.broadcast %47 : vector<1x128xi32> to vector<128x128xi32>
    %50 = arith.cmpi eq, %4, %49 : vector<128x128xi32>
    %51 = vector.broadcast %48 : vector<1x128xi32> to vector<128x128xi32>
    %52 = arith.cmpi eq, %4, %51 : vector<128x128xi32>
    %53 = arith.ori %50, %52 : vector<128x128xi1>
    %54 = arith.extui %53 : vector<128x128xi1> to vector<128x128xi32>
    %55 = arith.sitofp %54 : vector<128x128xi32> to vector<128x128xf32>
    %cst_25 = arith.constant dense<0.000000e+00> : vector<32x128xf32>
    %56 = tpu.matmul %0, %55, %cst_25 {dimension_numbers = #tpu.dot_dimension_numbers<[1], [0], [0], [1], [0, 0, 1, 1], [], []>} : vector<32x128xf32>, vector<128x128xf32>, vector<32x128xf32> -> vector<32x128xf32>
    %57 = vector.broadcast %1 : vector<32x1xf32> to vector<32x128xf32>
    %58 = arith.addf %56, %57 : vector<32x128xf32>
    %cst_26 = arith.constant 0.000000e+00 : f32
    %59 = vector.broadcast %cst_26 : f32 to vector<32x128xf32>
    %60 = arith.maximumf %58, %59 : vector<32x128xf32>
    %61 = vector.broadcast %2 : vector<32x1xf32> to vector<32x128xf32>
    %62 = arith.mulf %60, %61 : vector<32x128xf32>
    %cst_27 = arith.constant dense<0.000000e+00> : vector<128xf32>
    %63 = vector.multi_reduction <add>, %62, %cst_27 [0] : vector<32x128xf32> to vector<128xf32>
    %64 = vector.shape_cast %63 : vector<128xf32> to vector<1x128xf32>
    %65 = vector.broadcast %3 : f32 to vector<1x128xf32>
    %66 = arith.addf %64, %65 : vector<1x128xf32>
    %c2_28 = arith.constant 2 : index
    %c0_29 = arith.constant 0 : index
    %67 = vector.load %arg7[%c2_28, %c0_29] : memref<8x128xf32, #tpu.memory_space<vmem>>, vector<1x128xf32>
    tpu.vector_store %arg7[%c2_28, %c0_29], %66 {strides = array<i32>} : memref<8x128xf32, #tpu.memory_space<vmem>>, vector<1x128xf32>,
    %c3 = arith.constant 3 : index
    %c0_30 = arith.constant 0 : index
    %68 = vector.load %arg2[%c3, %c0_30] : memref<8x128xi32, #tpu.memory_space<vmem>>, vector<1x128xi32>
    %c3_31 = arith.constant 3 : index
    %c0_32 = arith.constant 0 : index
    %69 = vector.load %arg3[%c3_31, %c0_32] : memref<8x128xi32, #tpu.memory_space<vmem>>, vector<1x128xi32>
    %70 = vector.broadcast %68 : vector<1x128xi32> to vector<128x128xi32>
    %71 = arith.cmpi eq, %4, %70 : vector<128x128xi32>
    %72 = vector.broadcast %69 : vector<1x128xi32> to vector<128x128xi32>
    %73 = arith.cmpi eq, %4, %72 : vector<128x128xi32>
    %74 = arith.ori %71, %73 : vector<128x128xi1>
    %75 = arith.extui %74 : vector<128x128xi1> to vector<128x128xi32>
    %76 = arith.sitofp %75 : vector<128x128xi32> to vector<128x128xf32>
    %cst_33 = arith.constant dense<0.000000e+00> : vector<32x128xf32>
    %77 = tpu.matmul %0, %76, %cst_33 {dimension_numbers = #tpu.dot_dimension_numbers<[1], [0], [0], [1], [0, 0, 1, 1], [], []>} : vector<32x128xf32>, vector<128x128xf32>, vector<32x128xf32> -> vector<32x128xf32>
    %78 = vector.broadcast %1 : vector<32x1xf32> to vector<32x128xf32>
    %79 = arith.addf %77, %78 : vector<32x128xf32>
    %cst_34 = arith.constant 0.000000e+00 : f32
    %80 = vector.broadcast %cst_34 : f32 to vector<32x128xf32>
    %81 = arith.maximumf %79, %80 : vector<32x128xf32>
    %82 = vector.broadcast %2 : vector<32x1xf32> to vector<32x128xf32>
    %83 = arith.mulf %81, %82 : vector<32x128xf32>
    %cst_35 = arith.constant dense<0.000000e+00> : vector<128xf32>
    %84 = vector.multi_reduction <add>, %83, %cst_35 [0] : vector<32x128xf32> to vector<128xf32>
    %85 = vector.shape_cast %84 : vector<128xf32> to vector<1x128xf32>
    %86 = vector.broadcast %3 : f32 to vector<1x128xf32>
    %87 = arith.addf %85, %86 : vector<1x128xf32>
    %c3_36 = arith.constant 3 : index
    %c0_37 = arith.constant 0 : index
    %88 = vector.load %arg7[%c3_36, %c0_37] : memref<8x128xf32, #tpu.memory_space<vmem>>, vector<1x128xf32>
    tpu.vector_store %arg7[%c3_36, %c0_37], %87 {strides = array<i32>} : memref<8x128xf32, #tpu.memory_space<vmem>>, vector<1x128xf32>,
    %c4 = arith.constant 4 : index
    %c0_38 = arith.constant 0 : index
    %89 = vector.load %arg2[%c4, %c0_38] : memref<8x128xi32, #tpu.memory_space<vmem>>, vector<1x128xi32>
    %c4_39 = arith.constant 4 : index
    %c0_40 = arith.constant 0 : index
    %90 = vector.load %arg3[%c4_39, %c0_40] : memref<8x128xi32, #tpu.memory_space<vmem>>, vector<1x128xi32>
    %91 = vector.broadcast %89 : vector<1x128xi32> to vector<128x128xi32>
    %92 = arith.cmpi eq, %4, %91 : vector<128x128xi32>
    %93 = vector.broadcast %90 : vector<1x128xi32> to vector<128x128xi32>
    %94 = arith.cmpi eq, %4, %93 : vector<128x128xi32>
    %95 = arith.ori %92, %94 : vector<128x128xi1>
    %96 = arith.extui %95 : vector<128x128xi1> to vector<128x128xi32>
    %97 = arith.sitofp %96 : vector<128x128xi32> to vector<128x128xf32>
    %cst_41 = arith.constant dense<0.000000e+00> : vector<32x128xf32>
    %98 = tpu.matmul %0, %97, %cst_41 {dimension_numbers = #tpu.dot_dimension_numbers<[1], [0], [0], [1], [0, 0, 1, 1], [], []>} : vector<32x128xf32>, vector<128x128xf32>, vector<32x128xf32> -> vector<32x128xf32>
    %99 = vector.broadcast %1 : vector<32x1xf32> to vector<32x128xf32>
    %100 = arith.addf %98, %99 : vector<32x128xf32>
    %cst_42 = arith.constant 0.000000e+00 : f32
    %101 = vector.broadcast %cst_42 : f32 to vector<32x128xf32>
    %102 = arith.maximumf %100, %101 : vector<32x128xf32>
    %103 = vector.broadcast %2 : vector<32x1xf32> to vector<32x128xf32>
    %104 = arith.mulf %102, %103 : vector<32x128xf32>
    %cst_43 = arith.constant dense<0.000000e+00> : vector<128xf32>
    %105 = vector.multi_reduction <add>, %104, %cst_43 [0] : vector<32x128xf32> to vector<128xf32>
    %106 = vector.shape_cast %105 : vector<128xf32> to vector<1x128xf32>
    %107 = vector.broadcast %3 : f32 to vector<1x128xf32>
    %108 = arith.addf %106, %107 : vector<1x128xf32>
    %c4_44 = arith.constant 4 : index
    %c0_45 = arith.constant 0 : index
    %109 = vector.load %arg7[%c4_44, %c0_45] : memref<8x128xf32, #tpu.memory_space<vmem>>, vector<1x128xf32>
    tpu.vector_store %arg7[%c4_44, %c0_45], %108 {strides = array<i32>} : memref<8x128xf32, #tpu.memory_space<vmem>>, vector<1x128xf32>,
    %c5 = arith.constant 5 : index
    %c0_46 = arith.constant 0 : index
    %110 = vector.load %arg2[%c5, %c0_46] : memref<8x128xi32, #tpu.memory_space<vmem>>, vector<1x128xi32>
    %c5_47 = arith.constant 5 : index
    %c0_48 = arith.constant 0 : index
    %111 = vector.load %arg3[%c5_47, %c0_48] : memref<8x128xi32, #tpu.memory_space<vmem>>, vector<1x128xi32>
    %112 = vector.broadcast %110 : vector<1x128xi32> to vector<128x128xi32>
    %113 = arith.cmpi eq, %4, %112 : vector<128x128xi32>
    %114 = vector.broadcast %111 : vector<1x128xi32> to vector<128x128xi32>
    %115 = arith.cmpi eq, %4, %114 : vector<128x128xi32>
    %116 = arith.ori %113, %115 : vector<128x128xi1>
    %117 = arith.extui %116 : vector<128x128xi1> to vector<128x128xi32>
    %118 = arith.sitofp %117 : vector<128x128xi32> to vector<128x128xf32>
    %cst_49 = arith.constant dense<0.000000e+00> : vector<32x128xf32>
    %119 = tpu.matmul %0, %118, %cst_49 {dimension_numbers = #tpu.dot_dimension_numbers<[1], [0], [0], [1], [0, 0, 1, 1], [], []>} : vector<32x128xf32>, vector<128x128xf32>, vector<32x128xf32> -> vector<32x128xf32>
    %120 = vector.broadcast %1 : vector<32x1xf32> to vector<32x128xf32>
    %121 = arith.addf %119, %120 : vector<32x128xf32>
    %cst_50 = arith.constant 0.000000e+00 : f32
    %122 = vector.broadcast %cst_50 : f32 to vector<32x128xf32>
    %123 = arith.maximumf %121, %122 : vector<32x128xf32>
    %124 = vector.broadcast %2 : vector<32x1xf32> to vector<32x128xf32>
    %125 = arith.mulf %123, %124 : vector<32x128xf32>
    %cst_51 = arith.constant dense<0.000000e+00> : vector<128xf32>
    %126 = vector.multi_reduction <add>, %125, %cst_51 [0] : vector<32x128xf32> to vector<128xf32>
    %127 = vector.shape_cast %126 : vector<128xf32> to vector<1x128xf32>
    %128 = vector.broadcast %3 : f32 to vector<1x128xf32>
    %129 = arith.addf %127, %128 : vector<1x128xf32>
    %c5_52 = arith.constant 5 : index
    %c0_53 = arith.constant 0 : index
    %130 = vector.load %arg7[%c5_52, %c0_53] : memref<8x128xf32, #tpu.memory_space<vmem>>, vector<1x128xf32>
    tpu.vector_store %arg7[%c5_52, %c0_53], %129 {strides = array<i32>} : memref<8x128xf32, #tpu.memory_space<vmem>>, vector<1x128xf32>,
    %c6 = arith.constant 6 : index
    %c0_54 = arith.constant 0 : index
    %131 = vector.load %arg2[%c6, %c0_54] : memref<8x128xi32, #tpu.memory_space<vmem>>, vector<1x128xi32>
    %c6_55 = arith.constant 6 : index
    %c0_56 = arith.constant 0 : index
    %132 = vector.load %arg3[%c6_55, %c0_56] : memref<8x128xi32, #tpu.memory_space<vmem>>, vector<1x128xi32>
    %133 = vector.broadcast %131 : vector<1x128xi32> to vector<128x128xi32>
    %134 = arith.cmpi eq, %4, %133 : vector<128x128xi32>
    %135 = vector.broadcast %132 : vector<1x128xi32> to vector<128x128xi32>
    %136 = arith.cmpi eq, %4, %135 : vector<128x128xi32>
    %137 = arith.ori %134, %136 : vector<128x128xi1>
    %138 = arith.extui %137 : vector<128x128xi1> to vector<128x128xi32>
    %139 = arith.sitofp %138 : vector<128x128xi32> to vector<128x128xf32>
    %cst_57 = arith.constant dense<0.000000e+00> : vector<32x128xf32>
    %140 = tpu.matmul %0, %139, %cst_57 {dimension_numbers = #tpu.dot_dimension_numbers<[1], [0], [0], [1], [0, 0, 1, 1], [], []>} : vector<32x128xf32>, vector<128x128xf32>, vector<32x128xf32> -> vector<32x128xf32>
    %141 = vector.broadcast %1 : vector<32x1xf32> to vector<32x128xf32>
    %142 = arith.addf %140, %141 : vector<32x128xf32>
    %cst_58 = arith.constant 0.000000e+00 : f32
    %143 = vector.broadcast %cst_58 : f32 to vector<32x128xf32>
    %144 = arith.maximumf %142, %143 : vector<32x128xf32>
    %145 = vector.broadcast %2 : vector<32x1xf32> to vector<32x128xf32>
    %146 = arith.mulf %144, %145 : vector<32x128xf32>
    %cst_59 = arith.constant dense<0.000000e+00> : vector<128xf32>
    %147 = vector.multi_reduction <add>, %146, %cst_59 [0] : vector<32x128xf32> to vector<128xf32>
    %148 = vector.shape_cast %147 : vector<128xf32> to vector<1x128xf32>
    %149 = vector.broadcast %3 : f32 to vector<1x128xf32>
    %150 = arith.addf %148, %149 : vector<1x128xf32>
    %c6_60 = arith.constant 6 : index
    %c0_61 = arith.constant 0 : index
    %151 = vector.load %arg7[%c6_60, %c0_61] : memref<8x128xf32, #tpu.memory_space<vmem>>, vector<1x128xf32>
    tpu.vector_store %arg7[%c6_60, %c0_61], %150 {strides = array<i32>} : memref<8x128xf32, #tpu.memory_space<vmem>>, vector<1x128xf32>,
    %c7 = arith.constant 7 : index
    %c0_62 = arith.constant 0 : index
    %152 = vector.load %arg2[%c7, %c0_62] : memref<8x128xi32, #tpu.memory_space<vmem>>, vector<1x128xi32>
    %c7_63 = arith.constant 7 : index
    %c0_64 = arith.constant 0 : index
    %153 = vector.load %arg3[%c7_63, %c0_64] : memref<8x128xi32, #tpu.memory_space<vmem>>, vector<1x128xi32>
    %154 = vector.broadcast %152 : vector<1x128xi32> to vector<128x128xi32>
    %155 = arith.cmpi eq, %4, %154 : vector<128x128xi32>
    %156 = vector.broadcast %153 : vector<1x128xi32> to vector<128x128xi32>
    %157 = arith.cmpi eq, %4, %156 : vector<128x128xi32>
    %158 = arith.ori %155, %157 : vector<128x128xi1>
    %159 = arith.extui %158 : vector<128x128xi1> to vector<128x128xi32>
    %160 = arith.sitofp %159 : vector<128x128xi32> to vector<128x128xf32>
    %cst_65 = arith.constant dense<0.000000e+00> : vector<32x128xf32>
    %161 = tpu.matmul %0, %160, %cst_65 {dimension_numbers = #tpu.dot_dimension_numbers<[1], [0], [0], [1], [0, 0, 1, 1], [], []>} : vector<32x128xf32>, vector<128x128xf32>, vector<32x128xf32> -> vector<32x128xf32>
    %162 = vector.broadcast %1 : vector<32x1xf32> to vector<32x128xf32>
    %163 = arith.addf %161, %162 : vector<32x128xf32>
    %cst_66 = arith.constant 0.000000e+00 : f32
    %164 = vector.broadcast %cst_66 : f32 to vector<32x128xf32>
    %165 = arith.maximumf %163, %164 : vector<32x128xf32>
    %166 = vector.broadcast %2 : vector<32x1xf32> to vector<32x128xf32>
    %167 = arith.mulf %165, %166 : vector<32x128xf32>
    %cst_67 = arith.constant dense<0.000000e+00> : vector<128xf32>
    %168 = vector.multi_reduction <add>, %167, %cst_67 [0] : vector<32x128xf32> to vector<128xf32>
    %169 = vector.shape_cast %168 : vector<128xf32> to vector<1x128xf32>
    %170 = vector.broadcast %3 : f32 to vector<1x128xf32>
    %171 = arith.addf %169, %170 : vector<1x128xf32>
    %c7_68 = arith.constant 7 : index
    %c0_69 = arith.constant 0 : index
    %172 = vector.load %arg7[%c7_68, %c0_69] : memref<8x128xf32, #tpu.memory_space<vmem>>, vector<1x128xf32>
    tpu.vector_store %arg7[%c7_68, %c0_69], %171 {strides = array<i32>} : memref<8x128xf32, #tpu.memory_space<vmem>>, vector<1x128xf32>,
    return
  }
  func.func @transform_0(%arg0: i32) -> (i32, i32) {
    %c0_i32 = arith.constant 0 : i32
    %c0_i32_0 = arith.constant 0 : i32
    %c0_i32_1 = arith.constant 0 : i32
    return %c0_i32, %c0_i32_0 : i32, i32
  }
  func.func @transform_1(%arg0: i32) -> (i32, i32) {
    %c0_i32 = arith.constant 0 : i32
    %c0_i32_0 = arith.constant 0 : i32
    return %arg0, %c0_i32 : i32, i32
  }
  func.func @transform_2(%arg0: i32) -> (i32, i32) {
    %c0_i32 = arith.constant 0 : i32
    %c0_i32_0 = arith.constant 0 : i32
    return %arg0, %c0_i32 : i32, i32
  }
  func.func @transform_3(%arg0: i32) -> (i32, i32) {
    %c0_i32 = arith.constant 0 : i32
    %c0_i32_0 = arith.constant 0 : i32
    %c0_i32_1 = arith.constant 0 : i32
    return %c0_i32, %c0_i32_0 : i32, i32
  }
  func.func @transform_4(%arg0: i32) -> (i32, i32) {
    %c0_i32 = arith.constant 0 : i32
    %c0_i32_0 = arith.constant 0 : i32
    %c0_i32_1 = arith.constant 0 : i32
    return %c0_i32, %c0_i32_0 : i32, i32
  }
  func.func @transform_5(%arg0: i32) -> i32 {
    %c0_i32 = arith.constant 0 : i32
    %c0_i32_0 = arith.constant 0 : i32
    return %c0_i32 : i32
  }
  func.func @transform_6(%arg0: i32) -> (i32, i32) {
    %c0_i32 = arith.constant 0 : i32
    %c0_i32_0 = arith.constant 0 : i32
    return %arg0, %c0_i32 : i32, i32
  }
}

</mosaic_0001>

<llo_original>
// kernel: tpu_custom_call.1
$region0: #{tpu_custom_call.1}
  #allocation0 [shape = 'u32[]', space=smem, size = 0x4, offset = 0x4, fixed_abs, tag = 'smem constant byte address 0x4 - core index']
  #allocation1 [shape = 'u32[144,128]{1,0:T(1,128)}', space=vmem, size = 0x12000, scoped, tag = 'internal scratch']
  #allocation2 [shape = 'f32[1]{0:T(128)S(6)}', space=smem, size = 0x200, scoped, tag = 'scoped memory for tpu_custom_call.1']
  %s0 = inlined_call_operand.vmem [shape: f32[32,128], index: 0, kind: input, shape index: {}]
  %s1 = inlined_call_operand.vmem [shape: s32[16,128], index: 1, kind: input, shape index: {}]
  %s2 = inlined_call_operand.vmem [shape: s32[16,128], index: 2, kind: input, shape index: {}]
  %s3 = inlined_call_operand.vmem [shape: f32[32,1], index: 3, kind: input, shape index: {}]
  %s4 = inlined_call_operand.vmem [shape: f32[32,1], index: 4, kind: input, shape index: {}]
  %s5 = inlined_call_operand.<no memory space> [shape: f32[1], index: 5, kind: input, shape index: {}]
  %s6 = inlined_call_operand.hbm [shape: f32[16,128], index: 6, kind: output, shape index: {}]
  %s7 = sld [smem:[#allocation0]]
  $region57: #{tpu_custom_call.1} parent=0
    _
  %s9 = ssub.s32 1, %s7
  %s10 = scalar_select 0, %s9, %s7
  %11 = sst [smem:[#allocation2]] %s5
  $region1: #{tpu_custom_call.1} parent=0
    #allocation3 [shape = 'u8[8192]{0}', space=vmem, size = 0x2000, scoped, tag = 'output window, operand 0']
    #allocation4 [shape = 's32[2]{0}', space=sflag, size = 0x8, scoped, tag = 'scoped memory for tpu_custom_call.1']
    %12 = vsyncpa [#allocation4], 0
    %s13 = scalar_lea.sflag [#allocation4], 1
    %14 = vsyncpa %s13, 0
    loop: start=0, step=1, limit=4
    $region2: #{tpu_custom_call.1} parent=1 // loop_pre_header
      _
    $region3: #{tpu_custom_call.1} parent=1 // loop_header
      %s16 = sphi 0, %s20
      %p17 = scmp.ge.s32.totalorder %s16, 4
      %s24 = sphi 0, %s24
      %s26 = sphi 0, %s24
      %s27 = sphi 0, %s26
      %s41 = sphi 0, %s27
      %s47 = sphi 0, %s49
      %s50 = sphi 0, %s47
      %s51 = sphi 0, %s50
      %s67 = sphi 0, %s51
      %s73 = sphi 0, %s75
      %s76 = sphi 0, %s73
      %s77 = sphi 0, %s76
      %s93 = sphi 0, %s77
      %s97 = sphi 0, %s97
      %s99 = sphi 0, %s97
      %s100 = sphi 0, %s99
      %s114 = sphi 0, %s100
      %s118 = sphi 0, %s118
      %s120 = sphi 0, %s118
      %s121 = sphi 0, %s120
      %s135 = sphi 0, %s121
      %s139 = sphi 0, %s139
      %s141 = sphi 0, %s139
      %s142 = sphi 0, %s141
      %s156 = sphi 0, %s142
      %s162 = sphi 0, %s164
      %s165 = sphi 0, %s162
      %s166 = sphi 0, %s165
      %s182 = sphi 0, %s166
    $region4: #{tpu_custom_call.1} parent=1 // loop_header_branch
      %19 = sbr.rel (%p17) target = $region8
    $region5: #{tpu_custom_call.1} parent=1 // loop_body
      %s21 = ssub.s32 %s16, 1
      %s22 = ssub.s32 %s16, 2
      %s23 = sadd.s32 %s16, 1
      %s25 = sadd.s32 %s24, 1
      %p28 = scmp.eq.s32.totalorder %s16, 1
      %p29 = scmp.ne.s32.totalorder %s24, %s26
      %p30 = scmp.eq.s32.totalorder %s16, 0
      %p31 = por %p29, %p30
      %p32 = scmp.ne.s32.totalorder %s24, %s26
      %p33 = scmp.eq.s32.totalorder %s21, 1
      %p34 = por %p32, %p33
      %p35 = scmp.ne.s32.totalorder %s26, %s27
      %p36 = scmp.eq.s32.totalorder %s21, 0
      %p37 = por %p35, %p36
      %p38 = scmp.ne.s32.totalorder %s26, %s27
      %p39 = scmp.eq.s32.totalorder %s22, 1
      %p40 = por %p38, %p39
      %p42 = scmp.ne.s32.totalorder %s27, %s41
      %p43 = scmp.eq.s32.totalorder %s22, 0
      %p44 = por %p42, %p43
      %s45 = ssub.s32 %s16, %s23
      %p46 = scmp.eq.s32.totalorder %s45, 0
      %s48 = sadd.s32 %s47, 1
      %s49 = scalar_select %p46, %s47, %s48
      %p52 = pneg %p46
      %p53 = scmp.eq.s32.totalorder %s16, 1
      %p54 = por %p52, %p53
      %p55 = scmp.ne.s32.totalorder %s47, %s50
      %p56 = scmp.eq.s32.totalorder %s16, 0
      %p57 = por %p55, %p56
      %p58 = scmp.ne.s32.totalorder %s47, %s50
      %p59 = scmp.eq.s32.totalorder %s21, 1
      %p60 = por %p58, %p59
      %p61 = scmp.ne.s32.totalorder %s50, %s51
      %p62 = scmp.eq.s32.totalorder %s21, 0
      %p63 = por %p61, %p62
      %p64 = scmp.ne.s32.totalorder %s50, %s51
      %p65 = scmp.eq.s32.totalorder %s22, 1
      %p66 = por %p64, %p65
      %p68 = scmp.ne.s32.totalorder %s51, %s67
      %p69 = scmp.eq.s32.totalorder %s22, 0
      %p70 = por %p68, %p69
      %s71 = ssub.s32 %s16, %s23
      %p72 = scmp.eq.s32.totalorder %s71, 0
      %s74 = sadd.s32 %s73, 1
      %s75 = scalar_select %p72, %s73, %s74
      %p78 = pneg %p72
      %p79 = scmp.eq.s32.totalorder %s16, 1
      %p80 = por %p78, %p79
      %p81 = scmp.ne.s32.totalorder %s73, %s76
      %p82 = scmp.eq.s32.totalorder %s16, 0
      %p83 = por %p81, %p82
      %p84 = scmp.ne.s32.totalorder %s73, %s76
      %p85 = scmp.eq.s32.totalorder %s21, 1
      %p86 = por %p84, %p85
      %p87 = scmp.ne.s32.totalorder %s76, %s77
      %p88 = scmp.eq.s32.totalorder %s21, 0
      %p89 = por %p87, %p88
      %p90 = scmp.ne.s32.totalorder %s76, %s77
      %p91 = scmp.eq.s32.totalorder %s22, 1
      %p92 = por %p90, %p91
      %p94 = scmp.ne.s32.totalorder %s77, %s93
      %p95 = scmp.eq.s32.totalorder %s22, 0
      %p96 = por %p94, %p95
      %s98 = sadd.s32 %s97, 1
      %p101 = scmp.eq.s32.totalorder %s16, 1
      %p102 = scmp.ne.s32.totalorder %s97, %s99
      %p103 = scmp.eq.s32.totalorder %s16, 0
      %p104 = por %p102, %p103
      %p105 = scmp.ne.s32.totalorder %s97, %s99
      %p106 = scmp.eq.s32.totalorder %s21, 1
      %p107 = por %p105, %p106
      %p108 = scmp.ne.s32.totalorder %s99, %s100
      %p109 = scmp.eq.s32.totalorder %s21, 0
      %p110 = por %p108, %p109
      %p111 = scmp.ne.s32.totalorder %s99, %s100
      %p112 = scmp.eq.s32.totalorder %s22, 1
      %p113 = por %p111, %p112
      %p115 = scmp.ne.s32.totalorder %s100, %s114
      %p116 = scmp.eq.s32.totalorder %s22, 0
      %p117 = por %p115, %p116
      %s119 = sadd.s32 %s118, 1
      %p122 = scmp.eq.s32.totalorder %s16, 1
      %p123 = scmp.ne.s32.totalorder %s118, %s120
      %p124 = scmp.eq.s32.totalorder %s16, 0
      %p125 = por %p123, %p124
      %p126 = scmp.ne.s32.totalorder %s118, %s120
      %p127 = scmp.eq.s32.totalorder %s21, 1
      %p128 = por %p126, %p127
      %p129 = scmp.ne.s32.totalorder %s120, %s121
      %p130 = scmp.eq.s32.totalorder %s21, 0
      %p131 = por %p129, %p130
      %p132 = scmp.ne.s32.totalorder %s120, %s121
      %p133 = scmp.eq.s32.totalorder %s22, 1
      %p134 = por %p132, %p133
      %p136 = scmp.ne.s32.totalorder %s121, %s135
      %p137 = scmp.eq.s32.totalorder %s22, 0
      %p138 = por %p136, %p137
      %s140 = sadd.s32 %s139, 1
      %p143 = scmp.eq.s32.totalorder %s16, 1
      %p144 = scmp.ne.s32.totalorder %s139, %s141
      %p145 = scmp.eq.s32.totalorder %s16, 0
      %p146 = por %p144, %p145
      %p147 = scmp.ne.s32.totalorder %s139, %s141
      %p148 = scmp.eq.s32.totalorder %s21, 1
      %p149 = por %p147, %p148
      %p150 = scmp.ne.s32.totalorder %s141, %s142
      %p151 = scmp.eq.s32.totalorder %s21, 0
      %p152 = por %p150, %p151
      %p153 = scmp.ne.s32.totalorder %s141, %s142
      %p154 = scmp.eq.s32.totalorder %s22, 1
      %p155 = por %p153, %p154
      %p157 = scmp.ne.s32.totalorder %s142, %s156
      %p158 = scmp.eq.s32.totalorder %s22, 0
      %p159 = por %p157, %p158
      %s160 = ssub.s32 %s16, %s23
      %p161 = scmp.eq.s32.totalorder %s160, 0
      %s163 = sadd.s32 %s162, 1
      %s164 = scalar_select %p161, %s162, %s163
      %p167 = pneg %p161
      %p168 = scmp.eq.s32.totalorder %s16, 1
      %p169 = por %p167, %p168
      %p170 = scmp.ne.s32.totalorder %s162, %s165
      %p171 = scmp.eq.s32.totalorder %s16, 0
      %p172 = por %p170, %p171
      %p173 = scmp.ne.s32.totalorder %s162, %s165
      %p174 = scmp.eq.s32.totalorder %s21, 1
      %p175 = por %p173, %p174
      %p176 = scmp.ne.s32.totalorder %s165, %s166
      %p177 = scmp.eq.s32.totalorder %s21, 0
      %p178 = por %p176, %p177
      %p179 = scmp.ne.s32.totalorder %s165, %s166
      %p180 = scmp.eq.s32.totalorder %s22, 1
      %p181 = por %p179, %p180
      %p183 = scmp.ne.s32.totalorder %s166, %s182
      %p184 = scmp.eq.s32.totalorder %s22, 0
      %p185 = por %p183, %p184
      %p186 = scmp.le.s32.totalorder 1, %s16
      %p187 = scmp.lt.s32.totalorder %s16, 3
      %p188 = pnand %p186, %p187
      %p189 = pneg %p188
      // Predicated region
      $region9: #{tpu_custom_call.1} parent=5 // pred_check
        _
      $region10: #{tpu_custom_call.1} parent=5 // pred_check_branch
        %191 = sbr.rel (%p188) target = $region12
      $region11: #{tpu_custom_call.1} parent=5 // pred_region
        %s192 = ssub.s32 %s16, 1
        // Predicated region
        $region13: #{tpu_custom_call.1} parent=11 // pred_check
          %p193 = pneg %p37
        $region14: #{tpu_custom_call.1} parent=11 // pred_check_branch
          %195 = sbr.rel (%p193) target = $region16
        $region15: #{tpu_custom_call.1} parent=11 // pred_region
          _
        $region16: #{tpu_custom_call.1} parent=11 // pred_fallthru
          _
        // Predicated region
        $region17: #{tpu_custom_call.1} parent=11 // pred_check
          %p196 = pneg %p110
        $region18: #{tpu_custom_call.1} parent=11 // pred_check_branch
          %198 = sbr.rel (%p196) target = $region20
        $region19: #{tpu_custom_call.1} parent=11 // pred_region
          _
        $region20: #{tpu_custom_call.1} parent=11 // pred_fallthru
          _
        // Predicated region
        $region21: #{tpu_custom_call.1} parent=11 // pred_check
          %p199 = pneg %p131
        $region22: #{tpu_custom_call.1} parent=11 // pred_check_branch
          %201 = sbr.rel (%p199) target = $region24
        $region23: #{tpu_custom_call.1} parent=11 // pred_region
          _
        $region24: #{tpu_custom_call.1} parent=11 // pred_fallthru
          _
        // Predicated region
        $region25: #{tpu_custom_call.1} parent=11 // pred_check
          %p202 = pneg %p152
        $region26: #{tpu_custom_call.1} parent=11 // pred_check_branch
          %204 = sbr.rel (%p202) target = $region28
        $region27: #{tpu_custom_call.1} parent=11 // pred_region
          _
        $region28: #{tpu_custom_call.1} parent=11 // pred_fallthru
          _
      $region12: #{tpu_custom_call.1} parent=5 // pred_fallthru
        _
      %p205 = scmp.lt.s32.totalorder %s16, 2
      // Predicated region
      $region29: #{tpu_custom_call.1} parent=5 // pred_check
        %p206 = pneg %p205
      $region30: #{tpu_custom_call.1} parent=5 // pred_check_branch
        %208 = sbr.rel (%p206) target = $region32
      $region31: #{tpu_custom_call.1} parent=5 // pred_region
        // Predicated region
        $region33: #{tpu_custom_call.1} parent=31 // pred_check
          %p209 = pneg %p57
        $region34: #{tpu_custom_call.1} parent=31 // pred_check_branch
          %211 = sbr.rel (%p209) target = $region36
        $region35: #{tpu_custom_call.1} parent=31 // pred_region
          %p212 = scmp.lt.s32.totalorder %s16, 1
          %s213 = scalar_select %p212, %s16, 1
          %s214 = smul.addr %s213, 8
          %s215 = scalar_lea.vmem %s1, %s214
        $region36: #{tpu_custom_call.1} parent=31 // pred_fallthru
          _
        // Predicated region
        $region37: #{tpu_custom_call.1} parent=31 // pred_check
          %p216 = pneg %p83
        $region38: #{tpu_custom_call.1} parent=31 // pred_check_branch
          %218 = sbr.rel (%p216) target = $region40
        $region39: #{tpu_custom_call.1} parent=31 // pred_region
          %p219 = scmp.lt.s32.totalorder %s16, 1
          %s220 = scalar_select %p219, %s16, 1
          %s221 = smul.addr %s220, 8
          %s222 = scalar_lea.vmem %s2, %s221
        $region40: #{tpu_custom_call.1} parent=31 // pred_fallthru
          _
      $region32: #{tpu_custom_call.1} parent=5 // pred_fallthru
        _
      %p223 = scmp.le.s32.totalorder 1, %s16
      %p224 = scmp.lt.s32.totalorder %s16, 3
      %p225 = pnand %p223, %p224
      %p226 = pneg %p225
      // Predicated region
      $region41: #{tpu_custom_call.1} parent=5 // pred_check
        _
      $region42: #{tpu_custom_call.1} parent=5 // pred_check_branch
        %228 = sbr.rel (%p225) target = $region44
      $region43: #{tpu_custom_call.1} parent=5 // pred_region
        %s229 = ssub.s32 %s16, 1
        %p230 = pneg %p37
        %p231 = pneg %p34
        %p232 = scmp.lt.s32.totalorder %s21, 1
        %s233 = scalar_select %p232, %s21, 1
        %s234 = smul.addr %s233, 8
        %s235 = scalar_lea.vmem %s1, %s234
        %p236 = pneg %p63
        %p237 = pneg %p60
        %p238 = scmp.lt.s32.totalorder %s21, 1
        %s239 = scalar_select %p238, %s21, 1
        %s240 = smul.addr %s239, 8
        %s241 = scalar_lea.vmem %s2, %s240
        %p242 = pneg %p89
        %p243 = pneg %p86
        %p244 = pneg %p110
        %p245 = pneg %p107
        %p246 = pneg %p131
        %p247 = pneg %p128
        %p248 = pneg %p152
        %p249 = pneg %p149
        %p250 = pneg %p178
        %p251 = pneg %p175
        %s252 = sand.u32 %s165, 1
        %s253 = scalar_lea.sflag [#allocation4], %s252
        %s254 = sand.u32 %s165, 1
        %s255 = smul.addr %s254, 8
        %s256 = scalar_lea.vmem [#allocation3], %s255
        %p257 = scmp.lt.s32.totalorder %s21, 1
        %s258 = scalar_select %p257, %s21, 1
        %s259 = smul.addr %s258, 8
        %s260 = scalar_lea.vmem %s1, %s259
        %p261 = scmp.lt.s32.totalorder %s21, 1
        %s262 = scalar_select %p261, %s21, 1
        %s263 = smul.addr %s262, 8
        %s264 = scalar_lea.vmem %s2, %s263
        %v265 = vld [vmem:[%s0] sm:$0xff]
        %v266 = vld [vmem:[%s0 + $0x8] sm:$0xff]
        %v267 = vld [vmem:[%s0 + $0x10] sm:$0xff]
        %v268 = vld [vmem:[%s0 + $0x18] sm:$0xff]
        %v269 = vld [vmem:[%s3] sm:$0xff]
        %v270 = vld [vmem:[%s3 + $0x8] sm:$0xff]
        %v271 = vld [vmem:[%s3 + $0x10] sm:$0xff]
        %v272 = vld [vmem:[%s3 + $0x18] sm:$0xff]
        %v273 = vld [vmem:[%s4] sm:$0xff]
        %v274 = vld [vmem:[%s4 + $0x8] sm:$0xff]
        %v275 = vld [vmem:[%s4 + $0x10] sm:$0xff]
        %v276 = vld [vmem:[%s4 + $0x18] sm:$0xff]
        %s277 = sld [smem:[#allocation2]]
        %v278 = vlaneseq
        %v279 = vshrl.u32 %v278, 7
        %v280 = vadd.s32 %v279, 8
        %v281 = vadd.s32 %v279, 16
        %v282 = vadd.s32 %v279, 24
        %v283 = vadd.s32 %v279, 32
        %v284 = vadd.s32 %v279, 40
        %v285 = vadd.s32 %v279, 48
        %v286 = vadd.s32 %v279, 56
        %v287 = vadd.s32 %v279, 64
        %v288 = vadd.s32 %v279, 72
        %v289 = vadd.s32 %v279, 80
        %v290 = vadd.s32 %v279, 88
        %v291 = vadd.s32 %v279, 96
        %v292 = vadd.s32 %v279, 104
        %v293 = vadd.s32 %v279, 112
        %v294 = vadd.s32 %v279, 120
        %v295 = vld [vmem:[%s260] sm:$0x1]
        %v296 = vld [vmem:[%s264] sm:$0x1]
        %v297 = vlaneseq
        %v298 = vshrl.u32 %v297, 7
        %v299 = vsub.s32 0, %v298
        %v300 = vrot.slane %v295, %v299
        %vm301 = vcmp.eq.s32.totalorder %v279, %v300
        %vm302 = vcmp.eq.s32.totalorder %v280, %v300
        %vm303 = vcmp.eq.s32.totalorder %v281, %v300
        %vm304 = vcmp.eq.s32.totalorder %v282, %v300
        %vm305 = vcmp.eq.s32.totalorder %v283, %v300
        %vm306 = vcmp.eq.s32.totalorder %v284, %v300
        %vm307 = vcmp.eq.s32.totalorder %v285, %v300
        %vm308 = vcmp.eq.s32.totalorder %v286, %v300
        %vm309 = vcmp.eq.s32.totalorder %v287, %v300
        %vm310 = vcmp.eq.s32.totalorder %v288, %v300
        %vm311 = vcmp.eq.s32.totalorder %v289, %v300
        %vm312 = vcmp.eq.s32.totalorder %v290, %v300
        %vm313 = vcmp.eq.s32.totalorder %v291, %v300
        %vm314 = vcmp.eq.s32.totalorder %v292, %v300
        %vm315 = vcmp.eq.s32.totalorder %v293, %v300
        %vm316 = vcmp.eq.s32.totalorder %v294, %v300
        %v317 = vlaneseq
        %v318 = vshrl.u32 %v317, 7
        %v319 = vsub.s32 0, %v318
        %v320 = vrot.slane %v296, %v319
        %vm321 = vcmp.eq.s32.totalorder %v279, %v320
        %vm322 = vcmp.eq.s32.totalorder %v280, %v320
        %vm323 = vcmp.eq.s32.totalorder %v281, %v320
        %vm324 = vcmp.eq.s32.totalorder %v282, %v320
        %vm325 = vcmp.eq.s32.totalorder %v283, %v320
        %vm326 = vcmp.eq.s32.totalorder %v284, %v320
        %vm327 = vcmp.eq.s32.totalorder %v285, %v320
        %vm328 = vcmp.eq.s32.totalorder %v286, %v320
        %vm329 = vcmp.eq.s32.totalorder %v287, %v320
        %vm330 = vcmp.eq.s32.totalorder %v288, %v320
        %vm331 = vcmp.eq.s32.totalorder %v289, %v320
        %vm332 = vcmp.eq.s32.totalorder %v290, %v320
        %vm333 = vcmp.eq.s32.totalorder %v291, %v320
        %vm334 = vcmp.eq.s32.totalorder %v292, %v320
        %vm335 = vcmp.eq.s32.totalorder %v293, %v320
        %vm336 = vcmp.eq.s32.totalorder %v294, %v320
        %vm337 = vmor %vm301, %vm321
        %vm338 = vmor %vm302, %vm322
        %vm339 = vmor %vm303, %vm323
        %vm340 = vmor %vm304, %vm324
        %vm341 = vmor %vm305, %vm325
        %vm342 = vmor %vm306, %vm326
        %vm343 = vmor %vm307, %vm327
        %vm344 = vmor %vm308, %vm328
        %vm345 = vmor %vm309, %vm329
        %vm346 = vmor %vm310, %vm330
        %vm347 = vmor %vm311, %vm331
        %vm348 = vmor %vm312, %vm332
        %vm349 = vmor %vm313, %vm333
        %vm350 = vmor %vm314, %vm334
        %vm351 = vmor %vm315, %vm335
        %vm352 = vmor %vm316, %vm336
        %v353 = vsel %vm337, 1, 0
        %v354 = vsel %vm338, 1, 0
        %v355 = vsel %vm339, 1, 0
        %v356 = vsel %vm340, 1, 0
        %v357 = vsel %vm341, 1, 0
        %v358 = vsel %vm342, 1, 0
        %v359 = vsel %vm343, 1, 0
        %v360 = vsel %vm344, 1, 0
        %v361 = vsel %vm345, 1, 0
        %v362 = vsel %vm346, 1, 0
        %v363 = vsel %vm347, 1, 0
        %v364 = vsel %vm348, 1, 0
        %v365 = vsel %vm349, 1, 0
        %v366 = vsel %vm350, 1, 0
        %v367 = vsel %vm351, 1, 0
        %v368 = vsel %vm352, 1, 0
        %v369 = vcvt.s32.f32 %v353
        %v370 = vcvt.s32.f32 %v354
        %v371 = vcvt.s32.f32 %v355
        %v372 = vcvt.s32.f32 %v356
        %v373 = vcvt.s32.f32 %v357
        %v374 = vcvt.s32.f32 %v358
        %v375 = vcvt.s32.f32 %v359
        %v376 = vcvt.s32.f32 %v360
        %v377 = vcvt.s32.f32 %v361
        %v378 = vcvt.s32.f32 %v362
        %v379 = vcvt.s32.f32 %v363
        %v380 = vcvt.s32.f32 %v364
        %v381 = vcvt.s32.f32 %v365
        %v382 = vcvt.s32.f32 %v366
        %v383 = vcvt.s32.f32 %v367
        %v384 = vcvt.s32.f32 %v368
        %386 = vset.pattern.permute.xlu0 0
        %387 = vperm.xlu0 %386, %v269
        %v388 = vpop.permute.xlu0 %387
        %391 = vset.pattern.permute.xlu0 0
        %392 = vperm.xlu0 %391, %v270
        %v393 = vpop.permute.xlu0 %392
        %396 = vset.pattern.permute.xlu0 0
        %397 = vperm.xlu0 %396, %v271
        %v398 = vpop.permute.xlu0 %397
        %401 = vset.pattern.permute.xlu0 0
        %402 = vperm.xlu0 %401, %v272
        %v403 = vpop.permute.xlu0 %402
        %405 = vmatprep.subr.mxu0 0.0
        %406 = vmatpush1.msra.mxu0 %v369
        %407 = vmatprep.subr.mxu0 0.0
        %408 = vmatpush1.msra.mxu0 %v370
        %409 = vmatprep.subr.mxu0 0.0
        %410 = vmatpush1.msra.mxu0 %v371
        %411 = vmatprep.subr.mxu0 0.0
        %412 = vmatpush1.msra.mxu0 %v372
        %413 = vmatprep.subr.mxu0 0.0
        %414 = vmatpush1.msra.mxu0 %v373
        %415 = vmatprep.subr.mxu0 0.0
        %416 = vmatpush1.msra.mxu0 %v374
        %417 = vmatprep.subr.mxu0 0.0
        %418 = vmatpush1.msra.mxu0 %v375
        %419 = vmatprep.subr.mxu0 0.0
        %420 = vmatpush1.msra.mxu0 %v376
        %421 = vmatprep.subr.mxu0 0.0
        %422 = vmatpush1.msra.mxu0 %v377
        %423 = vmatprep.subr.mxu0 0.0
        %424 = vmatpush1.msra.mxu0 %v378
        %425 = vmatprep.subr.mxu0 0.0
        %426 = vmatpush1.msra.mxu0 %v379
        %427 = vmatprep.subr.mxu0 0.0
        %428 = vmatpush1.msra.mxu0 %v380
        %429 = vmatprep.subr.mxu0 0.0
        %430 = vmatpush1.msra.mxu0 %v381
        %431 = vmatprep.subr.mxu0 0.0
        %432 = vmatpush1.msra.mxu0 %v382
        %433 = vmatprep.subr.mxu0 0.0
        %434 = vmatpush1.msra.mxu0 %v383
        %435 = vmatprep.subr.mxu0 0.0
        %436 = vmatpush1.msra.mxu0 %v384
        %437 = vmatprep.subr.mxu0 0.0
        %438 = vmatpush1.msra.mxu0 0.0
        %439 = vmatprep.subr.mxu0 0.0
        %440 = vmatpush1.msra.mxu0 0.0
        %441 = vmatprep.subr.mxu0 0.0
        %442 = vmatpush1.msra.mxu0 0.0
        %443 = vmatprep.subr.mxu0 0.0
        %444 = vmatpush1.msra.mxu0 0.0
        %445 = vmatprep.subr.mxu0 0.0
        %446 = vmatpush1.msra.mxu0 0.0
        %447 = vmatprep.subr.mxu0 0.0
        %448 = vmatpush1.msra.mxu0 0.0
        %449 = vmatprep.subr.mxu0 0.0
        %450 = vmatpush1.msra.mxu0 0.0
        %451 = vmatprep.subr.mxu0 0.0
        %452 = vmatpush1.msra.mxu0 0.0
        %453 = vmatprep.subr.mxu0 0.0
        %454 = vmatpush1.msra.mxu0 0.0
        %455 = vmatprep.subr.mxu0 0.0
        %456 = vmatpush1.msra.mxu0 0.0
        %457 = vmatprep.subr.mxu0 0.0
        %458 = vmatpush1.msra.mxu0 0.0
        %459 = vmatprep.subr.mxu0 0.0
        %460 = vmatpush1.msra.mxu0 0.0
        %461 = vmatprep.subr.mxu0 0.0
        %462 = vmatpush1.msra.mxu0 0.0
        %463 = vmatprep.subr.mxu0 0.0
        %464 = vmatpush1.msra.mxu0 0.0
        %465 = vmatprep.subr.mxu0 0.0
        %466 = vmatpush1.msra.mxu0 0.0
        %467 = vmatprep.subr.mxu0 0.0
        %468 = vmatpush1.msra.mxu0 0.0
        %469 = vmatprep.mubr.f32.mxu0 0.0
        %470 = vmatmul.mubr.f32.gmra.mrb[0].mxu0 %v265
        %v471 = vpop.f32.mrb[0].mxu0
        %v472 = vadd.f32 %v388, %v471
        %v473 = vpop.f32.mrb[0].mxu0
        %474 = vmatprep.mubr.f32.mxu0 0.0
        %475 = vmatmul.mubr.f32.gmra.mrb[0].mxu0 %v266
        %v476 = vpop.f32.mrb[0].mxu0
        %v477 = vadd.f32 %v393, %v476
        %v478 = vpop.f32.mrb[0].mxu0
        %479 = vmatprep.mubr.f32.mxu0 0.0
        %480 = vmatmul.mubr.f32.gmra.mrb[0].mxu0 %v267
        %v481 = vpop.f32.mrb[0].mxu0
        %v482 = vadd.f32 %v398, %v481
        %v483 = vpop.f32.mrb[0].mxu0
        %484 = vmatprep.mubr.f32.mxu0 0.0
        %485 = vmatmul.mubr.f32.gmra.mrb[0].mxu0 %v268
        %v486 = vpop.f32.mrb[0].mxu0
        %v487 = vadd.f32 %v403, %v486
        %v488 = vpop.f32.mrb[0].mxu0
        %489 = vdwg.mxu0
        %v490 = vmax.f32 %v472, 0.0
        %v491 = vmax.f32 %v477, 0.0
        %v492 = vmax.f32 %v482, 0.0
        %v493 = vmax.f32 %v487, 0.0
        %495 = vset.pattern.permute.xlu0 0
        %496 = vperm.xlu0 %495, %v273
        %v497 = vpop.permute.xlu0 %496
        %500 = vset.pattern.permute.xlu0 0
        %501 = vperm.xlu0 %500, %v274
        %v502 = vpop.permute.xlu0 %501
        %505 = vset.pattern.permute.xlu0 0
        %506 = vperm.xlu0 %505, %v275
        %v507 = vpop.permute.xlu0 %506
        %510 = vset.pattern.permute.xlu0 0
        %511 = vperm.xlu0 %510, %v276
        %v512 = vpop.permute.xlu0 %511
        %v514 = vmul.f32 %v490, %v497
        %v515 = vmul.f32 %v491, %v502
        %v516 = vmul.f32 %v492, %v507
        %v517 = vmul.f32 %v493, %v512
        %v518 = vadd.f32 %v514, %v515
        %v519 = vadd.f32 %v518, %v516
        %v520 = vadd.f32 %v519, %v517
        %v521 = vrot.slane %v520, 4
        %v522 = vadd.f32 %v520, %v521
        %v523 = vrot.slane %v522, 2
        %v524 = vadd.f32 %v522, %v523
        %v525 = vrot.slane %v524, 1
        %v526 = vadd.f32 %v524, %v525
        %v527 = vstv %s277
        %v528 = vadd.f32 %v526, %v527
        %529 = vst [vmem:[%s256] sm:$0x1] %v528
        %v530 = vld [vmem:[%s260 + $0x1] sm:$0x1]
        %v531 = vld [vmem:[%s264 + $0x1] sm:$0x1]
        %v532 = vlaneseq
        %v533 = vshrl.u32 %v532, 7
        %v534 = vsub.s32 0, %v533
        %v535 = vrot.slane %v530, %v534
        %vm536 = vcmp.eq.s32.totalorder %v279, %v535
        %vm537 = vcmp.eq.s32.totalorder %v280, %v535
        %vm538 = vcmp.eq.s32.totalorder %v281, %v535
        %vm539 = vcmp.eq.s32.totalorder %v282, %v535
        %vm540 = vcmp.eq.s32.totalorder %v283, %v535
        %vm541 = vcmp.eq.s32.totalorder %v284, %v535
        %vm542 = vcmp.eq.s32.totalorder %v285, %v535
        %vm543 = vcmp.eq.s32.totalorder %v286, %v535
        %vm544 = vcmp.eq.s32.totalorder %v287, %v535
        %vm545 = vcmp.eq.s32.totalorder %v288, %v535
        %vm546 = vcmp.eq.s32.totalorder %v289, %v535
        %vm547 = vcmp.eq.s32.totalorder %v290, %v535
        %vm548 = vcmp.eq.s32.totalorder %v291, %v535
        %vm549 = vcmp.eq.s32.totalorder %v292, %v535
        %vm550 = vcmp.eq.s32.totalorder %v293, %v535
        %vm551 = vcmp.eq.s32.totalorder %v294, %v535
        %v552 = vlaneseq
        %v553 = vshrl.u32 %v552, 7
        %v554 = vsub.s32 0, %v553
        %v555 = vrot.slane %v531, %v554
        %vm556 = vcmp.eq.s32.totalorder %v279, %v555
        %vm557 = vcmp.eq.s32.totalorder %v280, %v555
        %vm558 = vcmp.eq.s32.totalorder %v281, %v555
        %vm559 = vcmp.eq.s32.totalorder %v282, %v555
        %vm560 = vcmp.eq.s32.totalorder %v283, %v555
        %vm561 = vcmp.eq.s32.totalorder %v284, %v555
        %vm562 = vcmp.eq.s32.totalorder %v285, %v555
        %vm563 = vcmp.eq.s32.totalorder %v286, %v555
        %vm564 = vcmp.eq.s32.totalorder %v287, %v555
        %vm565 = vcmp.eq.s32.totalorder %v288, %v555
        %vm566 = vcmp.eq.s32.totalorder %v289, %v555
        %vm567 = vcmp.eq.s32.totalorder %v290, %v555
        %vm568 = vcmp.eq.s32.totalorder %v291, %v555
        %vm569 = vcmp.eq.s32.totalorder %v292, %v555
        %vm570 = vcmp.eq.s32.totalorder %v293, %v555
        %vm571 = vcmp.eq.s32.totalorder %v294, %v555
        %vm572 = vmor %vm536, %vm556
        %vm573 = vmor %vm537, %vm557
        %vm574 = vmor %vm538, %vm558
        %vm575 = vmor %vm539, %vm559
        %vm576 = vmor %vm540, %vm560
        %vm577 = vmor %vm541, %vm561
        %vm578 = vmor %vm542, %vm562
        %vm579 = vmor %vm543, %vm563
        %vm580 = vmor %vm544, %vm564
        %vm581 = vmor %vm545, %vm565
        %vm582 = vmor %vm546, %vm566
        %vm583 = vmor %vm547, %vm567
        %vm584 = vmor %vm548, %vm568
        %vm585 = vmor %vm549, %vm569
        %vm586 = vmor %vm550, %vm570
        %vm587 = vmor %vm551, %vm571
        %v588 = vsel %vm572, 1, 0
        %v589 = vsel %vm573, 1, 0
        %v590 = vsel %vm574, 1, 0
        %v591 = vsel %vm575, 1, 0
        %v592 = vsel %vm576, 1, 0
        %v593 = vsel %vm577, 1, 0
        %v594 = vsel %vm578, 1, 0
        %v595 = vsel %vm579, 1, 0
        %v596 = vsel %vm580, 1, 0
        %v597 = vsel %vm581, 1, 0
        %v598 = vsel %vm582, 1, 0
        %v599 = vsel %vm583, 1, 0
        %v600 = vsel %vm584, 1, 0
        %v601 = vsel %vm585, 1, 0
        %v602 = vsel %vm586, 1, 0
        %v603 = vsel %vm587, 1, 0
        %v604 = vcvt.s32.f32 %v588
        %v605 = vcvt.s32.f32 %v589
        %v606 = vcvt.s32.f32 %v590
        %v607 = vcvt.s32.f32 %v591
        %v608 = vcvt.s32.f32 %v592
        %v609 = vcvt.s32.f32 %v593
        %v610 = vcvt.s32.f32 %v594
        %v611 = vcvt.s32.f32 %v595
        %v612 = vcvt.s32.f32 %v596
        %v613 = vcvt.s32.f32 %v597
        %v614 = vcvt.s32.f32 %v598
        %v615 = vcvt.s32.f32 %v599
        %v616 = vcvt.s32.f32 %v600
        %v617 = vcvt.s32.f32 %v601
        %v618 = vcvt.s32.f32 %v602
        %v619 = vcvt.s32.f32 %v603
        %620 = vmatprep.subr.mxu0 0.0
        %621 = vmatpush1.msra.mxu0 %v604
        %622 = vmatprep.subr.mxu0 0.0
        %623 = vmatpush1.msra.mxu0 %v605
        %624 = vmatprep.subr.mxu0 0.0
        %625 = vmatpush1.msra.mxu0 %v606
        %626 = vmatprep.subr.mxu0 0.0
        %627 = vmatpush1.msra.mxu0 %v607
        %628 = vmatprep.subr.mxu0 0.0
        %629 = vmatpush1.msra.mxu0 %v608
        %630 = vmatprep.subr.mxu0 0.0
        %631 = vmatpush1.msra.mxu0 %v609
        %632 = vmatprep.subr.mxu0 0.0
        %633 = vmatpush1.msra.mxu0 %v610
        %634 = vmatprep.subr.mxu0 0.0
        %635 = vmatpush1.msra.mxu0 %v611
        %636 = vmatprep.subr.mxu0 0.0
        %637 = vmatpush1.msra.mxu0 %v612
        %638 = vmatprep.subr.mxu0 0.0
        %639 = vmatpush1.msra.mxu0 %v613
        %640 = vmatprep.subr.mxu0 0.0
        %641 = vmatpush1.msra.mxu0 %v614
        %642 = vmatprep.subr.mxu0 0.0
        %643 = vmatpush1.msra.mxu0 %v615
        %644 = vmatprep.subr.mxu0 0.0
        %645 = vmatpush1.msra.mxu0 %v616
        %646 = vmatprep.subr.mxu0 0.0
        %647 = vmatpush1.msra.mxu0 %v617
        %648 = vmatprep.subr.mxu0 0.0
        %649 = vmatpush1.msra.mxu0 %v618
        %650 = vmatprep.subr.mxu0 0.0
        %651 = vmatpush1.msra.mxu0 %v619
        %652 = vmatprep.subr.mxu0 0.0
        %653 = vmatpush1.msra.mxu0 0.0
        %654 = vmatprep.subr.mxu0 0.0
        %655 = vmatpush1.msra.mxu0 0.0
        %656 = vmatprep.subr.mxu0 0.0
        %657 = vmatpush1.msra.mxu0 0.0
        %658 = vmatprep.subr.mxu0 0.0
        %659 = vmatpush1.msra.mxu0 0.0
        %660 = vmatprep.subr.mxu0 0.0
        %661 = vmatpush1.msra.mxu0 0.0
        %662 = vmatprep.subr.mxu0 0.0
        %663 = vmatpush1.msra.mxu0 0.0
        %664 = vmatprep.subr.mxu0 0.0
        %665 = vmatpush1.msra.mxu0 0.0
        %666 = vmatprep.subr.mxu0 0.0
        %667 = vmatpush1.msra.mxu0 0.0
        %668 = vmatprep.subr.mxu0 0.0
        %669 = vmatpush1.msra.mxu0 0.0
        %670 = vmatprep.subr.mxu0 0.0
        %671 = vmatpush1.msra.mxu0 0.0
        %672 = vmatprep.subr.mxu0 0.0
        %673 = vmatpush1.msra.mxu0 0.0
        %674 = vmatprep.subr.mxu0 0.0
        %675 = vmatpush1.msra.mxu0 0.0
        %676 = vmatprep.subr.mxu0 0.0
        %677 = vmatpush1.msra.mxu0 0.0
        %678 = vmatprep.subr.mxu0 0.0
        %679 = vmatpush1.msra.mxu0 0.0
        %680 = vmatprep.subr.mxu0 0.0
        %681 = vmatpush1.msra.mxu0 0.0
        %682 = vmatprep.subr.mxu0 0.0
        %683 = vmatpush1.msra.mxu0 0.0
        %684 = vmatprep.mubr.f32.mxu0 0.0
        %685 = vmatmul.mubr.f32.gmra.mrb[0].mxu0 %v265
        %v686 = vpop.f32.mrb[0].mxu0
        %v687 = vadd.f32 %v388, %v686
        %v688 = vpop.f32.mrb[0].mxu0
        %689 = vmatprep.mubr.f32.mxu0 0.0
        %690 = vmatmul.mubr.f32.gmra.mrb[0].mxu0 %v266
        %v691 = vpop.f32.mrb[0].mxu0
        %v692 = vadd.f32 %v393, %v691
        %v693 = vpop.f32.mrb[0].mxu0
        %694 = vmatprep.mubr.f32.mxu0 0.0
        %695 = vmatmul.mubr.f32.gmra.mrb[0].mxu0 %v267
        %v696 = vpop.f32.mrb[0].mxu0
        %v697 = vadd.f32 %v398, %v696
        %v698 = vpop.f32.mrb[0].mxu0
        %699 = vmatprep.mubr.f32.mxu0 0.0
        %700 = vmatmul.mubr.f32.gmra.mrb[0].mxu0 %v268
        %v701 = vpop.f32.mrb[0].mxu0
        %v702 = vadd.f32 %v403, %v701
        %v703 = vpop.f32.mrb[0].mxu0
        %704 = vdwg.mxu0
        %v705 = vmax.f32 %v687, 0.0
        %v706 = vmax.f32 %v692, 0.0
        %v707 = vmax.f32 %v697, 0.0
        %v708 = vmax.f32 %v702, 0.0
        %v709 = vmul.f32 %v705, %v497
        %v710 = vmul.f32 %v706, %v502
        %v711 = vmul.f32 %v707, %v507
        %v712 = vmul.f32 %v708, %v512
        %v713 = vadd.f32 %v709, %v710
        %v714 = vadd.f32 %v713, %v711
        %v715 = vadd.f32 %v714, %v712
        %v716 = vrot.slane %v715, 4
        %v717 = vadd.f32 %v715, %v716
        %v718 = vrot.slane %v717, 2
        %v719 = vadd.f32 %v717, %v718
        %v720 = vrot.slane %v719, 1
        %v721 = vadd.f32 %v719, %v720
        %v722 = vadd.f32 %v721, %v527
        %723 = vst [vmem:[%s256 + $0x1] sm:$0x1] %v722
        %v724 = vld [vmem:[%s260 + $0x2] sm:$0x1]
        %v725 = vld [vmem:[%s264 + $0x2] sm:$0x1]
        %v726 = vlaneseq
        %v727 = vshrl.u32 %v726, 7
        %v728 = vsub.s32 0, %v727
        %v729 = vrot.slane %v724, %v728
        %vm730 = vcmp.eq.s32.totalorder %v279, %v729
        %vm731 = vcmp.eq.s32.totalorder %v280, %v729
        %vm732 = vcmp.eq.s32.totalorder %v281, %v729
        %vm733 = vcmp.eq.s32.totalorder %v282, %v729
        %vm734 = vcmp.eq.s32.totalorder %v283, %v729
        %vm735 = vcmp.eq.s32.totalorder %v284, %v729
        %vm736 = vcmp.eq.s32.totalorder %v285, %v729
        %vm737 = vcmp.eq.s32.totalorder %v286, %v729
        %vm738 = vcmp.eq.s32.totalorder %v287, %v729
        %vm739 = vcmp.eq.s32.totalorder %v288, %v729
        %vm740 = vcmp.eq.s32.totalorder %v289, %v729
        %vm741 = vcmp.eq.s32.totalorder %v290, %v729
        %vm742 = vcmp.eq.s32.totalorder %v291, %v729
        %vm743 = vcmp.eq.s32.totalorder %v292, %v729
        %vm744 = vcmp.eq.s32.totalorder %v293, %v729
        %vm745 = vcmp.eq.s32.totalorder %v294, %v729
        %v746 = vlaneseq
        %v747 = vshrl.u32 %v746, 7
        %v748 = vsub.s32 0, %v747
        %v749 = vrot.slane %v725, %v748
        %vm750 = vcmp.eq.s32.totalorder %v279, %v749
        %vm751 = vcmp.eq.s32.totalorder %v280, %v749
        %vm752 = vcmp.eq.s32.totalorder %v281, %v749
        %vm753 = vcmp.eq.s32.totalorder %v282, %v749
        %vm754 = vcmp.eq.s32.totalorder %v283, %v749
        %vm755 = vcmp.eq.s32.totalorder %v284, %v749
        %vm756 = vcmp.eq.s32.totalorder %v285, %v749
        %vm757 = vcmp.eq.s32.totalorder %v286, %v749
        %vm758 = vcmp.eq.s32.totalorder %v287, %v749
        %vm759 = vcmp.eq.s32.totalorder %v288, %v749
        %vm760 = vcmp.eq.s32.totalorder %v289, %v749
        %vm761 = vcmp.eq.s32.totalorder %v290, %v749
        %vm762 = vcmp.eq.s32.totalorder %v291, %v749
        %vm763 = vcmp.eq.s32.totalorder %v292, %v749
        %vm764 = vcmp.eq.s32.totalorder %v293, %v749
        %vm765 = vcmp.eq.s32.totalorder %v294, %v749
        %vm766 = vmor %vm730, %vm750
        %vm767 = vmor %vm731, %vm751
        %vm768 = vmor %vm732, %vm752
        %vm769 = vmor %vm733, %vm753
        %vm770 = vmor %vm734, %vm754
        %vm771 = vmor %vm735, %vm755
        %vm772 = vmor %vm736, %vm756
        %vm773 = vmor %vm737, %vm757
        %vm774 = vmor %vm738, %vm758
        %vm775 = vmor %vm739, %vm759
        %vm776 = vmor %vm740, %vm760
        %vm777 = vmor %vm741, %vm761
        %vm778 = vmor %vm742, %vm762
        %vm779 = vmor %vm743, %vm763
        %vm780 = vmor %vm744, %vm764
        %vm781 = vmor %vm745, %vm765
        %v782 = vsel %vm766, 1, 0
        %v783 = vsel %vm767, 1, 0
        %v784 = vsel %vm768, 1, 0
        %v785 = vsel %vm769, 1, 0
        %v786 = vsel %vm770, 1, 0
        %v787 = vsel %vm771, 1, 0
        %v788 = vsel %vm772, 1, 0
        %v789 = vsel %vm773, 1, 0
        %v790 = vsel %vm774, 1, 0
        %v791 = vsel %vm775, 1, 0
        %v792 = vsel %vm776, 1, 0
        %v793 = vsel %vm777, 1, 0
        %v794 = vsel %vm778, 1, 0
        %v795 = vsel %vm779, 1, 0
        %v796 = vsel %vm780, 1, 0
        %v797 = vsel %vm781, 1, 0
        %v798 = vcvt.s32.f32 %v782
        %v799 = vcvt.s32.f32 %v783
        %v800 = vcvt.s32.f32 %v784
        %v801 = vcvt.s32.f32 %v785
        %v802 = vcvt.s32.f32 %v786
        %v803 = vcvt.s32.f32 %v787
        %v804 = vcvt.s32.f32 %v788
        %v805 = vcvt.s32.f32 %v789
        %v806 = vcvt.s32.f32 %v790
        %v807 = vcvt.s32.f32 %v791
        %v808 = vcvt.s32.f32 %v792
        %v809 = vcvt.s32.f32 %v793
        %v810 = vcvt.s32.f32 %v794
        %v811 = vcvt.s32.f32 %v795
        %v812 = vcvt.s32.f32 %v796
        %v813 = vcvt.s32.f32 %v797
        %814 = vmatprep.subr.mxu0 0.0
        %815 = vmatpush1.msra.mxu0 %v798
        %816 = vmatprep.subr.mxu0 0.0
        %817 = vmatpush1.msra.mxu0 %v799
        %818 = vmatprep.subr.mxu0 0.0
        %819 = vmatpush1.msra.mxu0 %v800
        %820 = vmatprep.subr.mxu0 0.0
        %821 = vmatpush1.msra.mxu0 %v801
        %822 = vmatprep.subr.mxu0 0.0
        %823 = vmatpush1.msra.mxu0 %v802
        %824 = vmatprep.subr.mxu0 0.0
        %825 = vmatpush1.msra.mxu0 %v803
        %826 = vmatprep.subr.mxu0 0.0
        %827 = vmatpush1.msra.mxu0 %v804
        %828 = vmatprep.subr.mxu0 0.0
        %829 = vmatpush1.msra.mxu0 %v805
        %830 = vmatprep.subr.mxu0 0.0
        %831 = vmatpush1.msra.mxu0 %v806
        %832 = vmatprep.subr.mxu0 0.0
        %833 = vmatpush1.msra.mxu0 %v807
        %834 = vmatprep.subr.mxu0 0.0
        %835 = vmatpush1.msra.mxu0 %v808
        %836 = vmatprep.subr.mxu0 0.0
        %837 = vmatpush1.msra.mxu0 %v809
        %838 = vmatprep.subr.mxu0 0.0
        %839 = vmatpush1.msra.mxu0 %v810
        %840 = vmatprep.subr.mxu0 0.0
        %841 = vmatpush1.msra.mxu0 %v811
        %842 = vmatprep.subr.mxu0 0.0
        %843 = vmatpush1.msra.mxu0 %v812
        %844 = vmatprep.subr.mxu0 0.0
        %845 = vmatpush1.msra.mxu0 %v813
        %846 = vmatprep.subr.mxu0 0.0
        %847 = vmatpush1.msra.mxu0 0.0
        %848 = vmatprep.subr.mxu0 0.0
        %849 = vmatpush1.msra.mxu0 0.0
        %850 = vmatprep.subr.mxu0 0.0
        %851 = vmatpush1.msra.mxu0 0.0
        %852 = vmatprep.subr.mxu0 0.0
        %853 = vmatpush1.msra.mxu0 0.0
        %854 = vmatprep.subr.mxu0 0.0
        %855 = vmatpush1.msra.mxu0 0.0
        %856 = vmatprep.subr.mxu0 0.0
        %857 = vmatpush1.msra.mxu0 0.0
        %858 = vmatprep.subr.mxu0 0.0
        %859 = vmatpush1.msra.mxu0 0.0
        %860 = vmatprep.subr.mxu0 0.0
        %861 = vmatpush1.msra.mxu0 0.0
        %862 = vmatprep.subr.mxu0 0.0
        %863 = vmatpush1.msra.mxu0 0.0
        %864 = vmatprep.subr.mxu0 0.0
        %865 = vmatpush1.msra.mxu0 0.0
        %866 = vmatprep.subr.mxu0 0.0
        %867 = vmatpush1.msra.mxu0 0.0
        %868 = vmatprep.subr.mxu0 0.0
        %869 = vmatpush1.msra.mxu0 0.0
        %870 = vmatprep.subr.mxu0 0.0
        %871 = vmatpush1.msra.mxu0 0.0
        %872 = vmatprep.subr.mxu0 0.0
        %873 = vmatpush1.msra.mxu0 0.0
        %874 = vmatprep.subr.mxu0 0.0
        %875 = vmatpush1.msra.mxu0 0.0
        %876 = vmatprep.subr.mxu0 0.0
        %877 = vmatpush1.msra.mxu0 0.0
        %878 = vmatprep.mubr.f32.mxu0 0.0
        %879 = vmatmul.mubr.f32.gmra.mrb[0].mxu0 %v265
        %v880 = vpop.f32.mrb[0].mxu0
        %v881 = vadd.f32 %v388, %v880
        %v882 = vpop.f32.mrb[0].mxu0
        %883 = vmatprep.mubr.f32.mxu0 0.0
        %884 = vmatmul.mubr.f32.gmra.mrb[0].mxu0 %v266
        %v885 = vpop.f32.mrb[0].mxu0
        %v886 = vadd.f32 %v393, %v885
        %v887 = vpop.f32.mrb[0].mxu0
        %888 = vmatprep.mubr.f32.mxu0 0.0
        %889 = vmatmul.mubr.f32.gmra.mrb[0].mxu0 %v267
        %v890 = vpop.f32.mrb[0].mxu0
        %v891 = vadd.f32 %v398, %v890
        %v892 = vpop.f32.mrb[0].mxu0
        %893 = vmatprep.mubr.f32.mxu0 0.0
        %894 = vmatmul.mubr.f32.gmra.mrb[0].mxu0 %v268
        %v895 = vpop.f32.mrb[0].mxu0
        %v896 = vadd.f32 %v403, %v895
        %v897 = vpop.f32.mrb[0].mxu0
        %898 = vdwg.mxu0
        %v899 = vmax.f32 %v881, 0.0
        %v900 = vmax.f32 %v886, 0.0
        %v901 = vmax.f32 %v891, 0.0
        %v902 = vmax.f32 %v896, 0.0
        %v903 = vmul.f32 %v899, %v497
        %v904 = vmul.f32 %v900, %v502
        %v905 = vmul.f32 %v901, %v507
        %v906 = vmul.f32 %v902, %v512
        %v907 = vadd.f32 %v903, %v904
        %v908 = vadd.f32 %v907, %v905
        %v909 = vadd.f32 %v908, %v906
        %v910 = vrot.slane %v909, 4
        %v911 = vadd.f32 %v909, %v910
        %v912 = vrot.slane %v911, 2
        %v913 = vadd.f32 %v911, %v912
        %v914 = vrot.slane %v913, 1
        %v915 = vadd.f32 %v913, %v914
        %v916 = vadd.f32 %v915, %v527
        %917 = vst [vmem:[%s256 + $0x2] sm:$0x1] %v916
        %v918 = vld [vmem:[%s260 + $0x3] sm:$0x1]
        %v919 = vld [vmem:[%s264 + $0x3] sm:$0x1]
        %v920 = vlaneseq
        %v921 = vshrl.u32 %v920, 7
        %v922 = vsub.s32 0, %v921
        %v923 = vrot.slane %v918, %v922
        %vm924 = vcmp.eq.s32.totalorder %v279, %v923
        %vm925 = vcmp.eq.s32.totalorder %v280, %v923
        %vm926 = vcmp.eq.s32.totalorder %v281, %v923
        %vm927 = vcmp.eq.s32.totalorder %v282, %v923
        %vm928 = vcmp.eq.s32.totalorder %v283, %v923
        %vm929 = vcmp.eq.s32.totalorder %v284, %v923
        %vm930 = vcmp.eq.s32.totalorder %v285, %v923
        %vm931 = vcmp.eq.s32.totalorder %v286, %v923
        %vm932 = vcmp.eq.s32.totalorder %v287, %v923
        %vm933 = vcmp.eq.s32.totalorder %v288, %v923
        %vm934 = vcmp.eq.s32.totalorder %v289, %v923
        %vm935 = vcmp.eq.s32.totalorder %v290, %v923
        %vm936 = vcmp.eq.s32.totalorder %v291, %v923
        %vm937 = vcmp.eq.s32.totalorder %v292, %v923
        %vm938 = vcmp.eq.s32.totalorder %v293, %v923
        %vm939 = vcmp.eq.s32.totalorder %v294, %v923
        %v940 = vlaneseq
        %v941 = vshrl.u32 %v940, 7
        %v942 = vsub.s32 0, %v941
        %v943 = vrot.slane %v919, %v942
        %vm944 = vcmp.eq.s32.totalorder %v279, %v943
        %vm945 = vcmp.eq.s32.totalorder %v280, %v943
        %vm946 = vcmp.eq.s32.totalorder %v281, %v943
        %vm947 = vcmp.eq.s32.totalorder %v282, %v943
        %vm948 = vcmp.eq.s32.totalorder %v283, %v943
        %vm949 = vcmp.eq.s32.totalorder %v284, %v943
        %vm950 = vcmp.eq.s32.totalorder %v285, %v943
        %vm951 = vcmp.eq.s32.totalorder %v286, %v943
        %vm952 = vcmp.eq.s32.totalorder %v287, %v943
        %vm953 = vcmp.eq.s32.totalorder %v288, %v943
        %vm954 = vcmp.eq.s32.totalorder %v289, %v943
        %vm955 = vcmp.eq.s32.totalorder %v290, %v943
        %vm956 = vcmp.eq.s32.totalorder %v291, %v943
        %vm957 = vcmp.eq.s32.totalorder %v292, %v943
        %vm958 = vcmp.eq.s32.totalorder %v293, %v943
        %vm959 = vcmp.eq.s32.totalorder %v294, %v943
        %vm960 = vmor %vm924, %vm944
        %vm961 = vmor %vm925, %vm945
        %vm962 = vmor %vm926, %vm946
        %vm963 = vmor %vm927, %vm947
        %vm964 = vmor %vm928, %vm948
        %vm965 = vmor %vm929, %vm949
        %vm966 = vmor %vm930, %vm950
        %vm967 = vmor %vm931, %vm951
        %vm968 = vmor %vm932, %vm952
        %vm969 = vmor %vm933, %vm953
        %vm970 = vmor %vm934, %vm954
        %vm971 = vmor %vm935, %vm955
        %vm972 = vmor %vm936, %vm956
        %vm973 = vmor %vm937, %vm957
        %vm974 = vmor %vm938, %vm958
        %vm975 = vmor %vm939, %vm959
        %v976 = vsel %vm960, 1, 0
        %v977 = vsel %vm961, 1, 0
        %v978 = vsel %vm962, 1, 0
        %v979 = vsel %vm963, 1, 0
        %v980 = vsel %vm964, 1, 0
        %v981 = vsel %vm965, 1, 0
        %v982 = vsel %vm966, 1, 0
        %v983 = vsel %vm967, 1, 0
        %v984 = vsel %vm968, 1, 0
        %v985 = vsel %vm969, 1, 0
        %v986 = vsel %vm970, 1, 0
        %v987 = vsel %vm971, 1, 0
        %v988 = vsel %vm972, 1, 0
        %v989 = vsel %vm973, 1, 0
        %v990 = vsel %vm974, 1, 0
        %v991 = vsel %vm975, 1, 0
        %v992 = vcvt.s32.f32 %v976
        %v993 = vcvt.s32.f32 %v977
        %v994 = vcvt.s32.f32 %v978
        %v995 = vcvt.s32.f32 %v979
        %v996 = vcvt.s32.f32 %v980
        %v997 = vcvt.s32.f32 %v981
        %v998 = vcvt.s32.f32 %v982
        %v999 = vcvt.s32.f32 %v983
        %v1000 = vcvt.s32.f32 %v984
        %v1001 = vcvt.s32.f32 %v985
        %v1002 = vcvt.s32.f32 %v986
        %v1003 = vcvt.s32.f32 %v987
        %v1004 = vcvt.s32.f32 %v988
        %v1005 = vcvt.s32.f32 %v989
        %v1006 = vcvt.s32.f32 %v990
        %v1007 = vcvt.s32.f32 %v991
        %1008 = vmatprep.subr.mxu0 0.0
        %1009 = vmatpush1.msra.mxu0 %v992
        %1010 = vmatprep.subr.mxu0 0.0
        %1011 = vmatpush1.msra.mxu0 %v993
        %1012 = vmatprep.subr.mxu0 0.0
        %1013 = vmatpush1.msra.mxu0 %v994
        %1014 = vmatprep.subr.mxu0 0.0
        %1015 = vmatpush1.msra.mxu0 %v995
        %1016 = vmatprep.subr.mxu0 0.0
        %1017 = vmatpush1.msra.mxu0 %v996
        %1018 = vmatprep.subr.mxu0 0.0
        %1019 = vmatpush1.msra.mxu0 %v997
        %1020 = vmatprep.subr.mxu0 0.0
        %1021 = vmatpush1.msra.mxu0 %v998
        %1022 = vmatprep.subr.mxu0 0.0
        %1023 = vmatpush1.msra.mxu0 %v999
        %1024 = vmatprep.subr.mxu0 0.0
        %1025 = vmatpush1.msra.mxu0 %v1000
        %1026 = vmatprep.subr.mxu0 0.0
        %1027 = vmatpush1.msra.mxu0 %v1001
        %1028 = vmatprep.subr.mxu0 0.0
        %1029 = vmatpush1.msra.mxu0 %v1002
        %1030 = vmatprep.subr.mxu0 0.0
        %1031 = vmatpush1.msra.mxu0 %v1003
        %1032 = vmatprep.subr.mxu0 0.0
        %1033 = vmatpush1.msra.mxu0 %v1004
        %1034 = vmatprep.subr.mxu0 0.0
        %1035 = vmatpush1.msra.mxu0 %v1005
        %1036 = vmatprep.subr.mxu0 0.0
        %1037 = vmatpush1.msra.mxu0 %v1006
        %1038 = vmatprep.subr.mxu0 0.0
        %1039 = vmatpush1.msra.mxu0 %v1007
        %1040 = vmatprep.subr.mxu0 0.0
        %1041 = vmatpush1.msra.mxu0 0.0
        %1042 = vmatprep.subr.mxu0 0.0
        %1043 = vmatpush1.msra.mxu0 0.0
        %1044 = vmatprep.subr.mxu0 0.0
        %1045 = vmatpush1.msra.mxu0 0.0
        %1046 = vmatprep.subr.mxu0 0.0
        %1047 = vmatpush1.msra.mxu0 0.0
        %1048 = vmatprep.subr.mxu0 0.0
        %1049 = vmatpush1.msra.mxu0 0.0
        %1050 = vmatprep.subr.mxu0 0.0
        %1051 = vmatpush1.msra.mxu0 0.0
        %1052 = vmatprep.subr.mxu0 0.0
        %1053 = vmatpush1.msra.mxu0 0.0
        %1054 = vmatprep.subr.mxu0 0.0
        %1055 = vmatpush1.msra.mxu0 0.0
        %1056 = vmatprep.subr.mxu0 0.0
        %1057 = vmatpush1.msra.mxu0 0.0
        %1058 = vmatprep.subr.mxu0 0.0
        %1059 = vmatpush1.msra.mxu0 0.0
        %1060 = vmatprep.subr.mxu0 0.0
        %1061 = vmatpush1.msra.mxu0 0.0
        %1062 = vmatprep.subr.mxu0 0.0
        %1063 = vmatpush1.msra.mxu0 0.0
        %1064 = vmatprep.subr.mxu0 0.0
        %1065 = vmatpush1.msra.mxu0 0.0
        %1066 = vmatprep.subr.mxu0 0.0
        %1067 = vmatpush1.msra.mxu0 0.0
        %1068 = vmatprep.subr.mxu0 0.0
        %1069 = vmatpush1.msra.mxu0 0.0
        %1070 = vmatprep.subr.mxu0 0.0
        %1071 = vmatpush1.msra.mxu0 0.0
        %1072 = vmatprep.mubr.f32.mxu0 0.0
        %1073 = vmatmul.mubr.f32.gmra.mrb[0].mxu0 %v265
        %v1074 = vpop.f32.mrb[0].mxu0
        %v1075 = vadd.f32 %v388, %v1074
        %v1076 = vpop.f32.mrb[0].mxu0
        %1077 = vmatprep.mubr.f32.mxu0 0.0
        %1078 = vmatmul.mubr.f32.gmra.mrb[0].mxu0 %v266
        %v1079 = vpop.f32.mrb[0].mxu0
        %v1080 = vadd.f32 %v393, %v1079
        %v1081 = vpop.f32.mrb[0].mxu0
        %1082 = vmatprep.mubr.f32.mxu0 0.0
        %1083 = vmatmul.mubr.f32.gmra.mrb[0].mxu0 %v267
        %v1084 = vpop.f32.mrb[0].mxu0
        %v1085 = vadd.f32 %v398, %v1084
        %v1086 = vpop.f32.mrb[0].mxu0
        %1087 = vmatprep.mubr.f32.mxu0 0.0
        %1088 = vmatmul.mubr.f32.gmra.mrb[0].mxu0 %v268
        %v1089 = vpop.f32.mrb[0].mxu0
        %v1090 = vadd.f32 %v403, %v1089
        %v1091 = vpop.f32.mrb[0].mxu0
        %1092 = vdwg.mxu0
        %v1093 = vmax.f32 %v1075, 0.0
        %v1094 = vmax.f32 %v1080, 0.0
        %v1095 = vmax.f32 %v1085, 0.0
        %v1096 = vmax.f32 %v1090, 0.0
        %v1097 = vmul.f32 %v1093, %v497
        %v1098 = vmul.f32 %v1094, %v502
        %v1099 = vmul.f32 %v1095, %v507
        %v1100 = vmul.f32 %v1096, %v512
        %v1101 = vadd.f32 %v1097, %v1098
        %v1102 = vadd.f32 %v1101, %v1099
        %v1103 = vadd.f32 %v1102, %v1100
        %v1104 = vrot.slane %v1103, 4
        %v1105 = vadd.f32 %v1103, %v1104
        %v1106 = vrot.slane %v1105, 2
        %v1107 = vadd.f32 %v1105, %v1106
        %v1108 = vrot.slane %v1107, 1
        %v1109 = vadd.f32 %v1107, %v1108
        %v1110 = vadd.f32 %v1109, %v527
        %1111 = vst [vmem:[%s256 + $0x3] sm:$0x1] %v1110
        %v1112 = vld [vmem:[%s260 + $0x4] sm:$0x1]
        %v1113 = vld [vmem:[%s264 + $0x4] sm:$0x1]
        %v1114 = vlaneseq
        %v1115 = vshrl.u32 %v1114, 7
        %v1116 = vsub.s32 0, %v1115
        %v1117 = vrot.slane %v1112, %v1116
        %vm1118 = vcmp.eq.s32.totalorder %v279, %v1117
        %vm1119 = vcmp.eq.s32.totalorder %v280, %v1117
        %vm1120 = vcmp.eq.s32.totalorder %v281, %v1117
        %vm1121 = vcmp.eq.s32.totalorder %v282, %v1117
        %vm1122 = vcmp.eq.s32.totalorder %v283, %v1117
        %vm1123 = vcmp.eq.s32.totalorder %v284, %v1117
        %vm1124 = vcmp.eq.s32.totalorder %v285, %v1117
        %vm1125 = vcmp.eq.s32.totalorder %v286, %v1117
        %vm1126 = vcmp.eq.s32.totalorder %v287, %v1117
        %vm1127 = vcmp.eq.s32.totalorder %v288, %v1117
        %vm1128 = vcmp.eq.s32.totalorder %v289, %v1117
        %vm1129 = vcmp.eq.s32.totalorder %v290, %v1117
        %vm1130 = vcmp.eq.s32.totalorder %v291, %v1117
        %vm1131 = vcmp.eq.s32.totalorder %v292, %v1117
        %vm1132 = vcmp.eq.s32.totalorder %v293, %v1117
        %vm1133 = vcmp.eq.s32.totalorder %v294, %v1117
        %v1134 = vlaneseq
        %v1135 = vshrl.u32 %v1134, 7
        %v1136 = vsub.s32 0, %v1135
        %v1137 = vrot.slane %v1113, %v1136
        %vm1138 = vcmp.eq.s32.totalorder %v279, %v1137
        %vm1139 = vcmp.eq.s32.totalorder %v280, %v1137
        %vm1140 = vcmp.eq.s32.totalorder %v281, %v1137
        %vm1141 = vcmp.eq.s32.totalorder %v282, %v1137
        %vm1142 = vcmp.eq.s32.totalorder %v283, %v1137
        %vm1143 = vcmp.eq.s32.totalorder %v284, %v1137
        %vm1144 = vcmp.eq.s32.totalorder %v285, %v1137
        %vm1145 = vcmp.eq.s32.totalorder %v286, %v1137
        %vm1146 = vcmp.eq.s32.totalorder %v287, %v1137
        %vm1147 = vcmp.eq.s32.totalorder %v288, %v1137
        %vm1148 = vcmp.eq.s32.totalorder %v289, %v1137
        %vm1149 = vcmp.eq.s32.totalorder %v290, %v1137
        %vm1150 = vcmp.eq.s32.totalorder %v291, %v1137
        %vm1151 = vcmp.eq.s32.totalorder %v292, %v1137
        %vm1152 = vcmp.eq.s32.totalorder %v293, %v1137
        %vm1153 = vcmp.eq.s32.totalorder %v294, %v1137
        %vm1154 = vmor %vm1118, %vm1138
        %vm1155 = vmor %vm1119, %vm1139
        %vm1156 = vmor %vm1120, %vm1140
        %vm1157 = vmor %vm1121, %vm1141
        %vm1158 = vmor %vm1122, %vm1142
        %vm1159 = vmor %vm1123, %vm1143
        %vm1160 = vmor %vm1124, %vm1144
        %vm1161 = vmor %vm1125, %vm1145
        %vm1162 = vmor %vm1126, %vm1146
        %vm1163 = vmor %vm1127, %vm1147
        %vm1164 = vmor %vm1128, %vm1148
        %vm1165 = vmor %vm1129, %vm1149
        %vm1166 = vmor %vm1130, %vm1150
        %vm1167 = vmor %vm1131, %vm1151
        %vm1168 = vmor %vm1132, %vm1152
        %vm1169 = vmor %vm1133, %vm1153
        %v1170 = vsel %vm1154, 1, 0
        %v1171 = vsel %vm1155, 1, 0
        %v1172 = vsel %vm1156, 1, 0
        %v1173 = vsel %vm1157, 1, 0
        %v1174 = vsel %vm1158, 1, 0
        %v1175 = vsel %vm1159, 1, 0
        %v1176 = vsel %vm1160, 1, 0
        %v1177 = vsel %vm1161, 1, 0
        %v1178 = vsel %vm1162, 1, 0
        %v1179 = vsel %vm1163, 1, 0
        %v1180 = vsel %vm1164, 1, 0
        %v1181 = vsel %vm1165, 1, 0
        %v1182 = vsel %vm1166, 1, 0
        %v1183 = vsel %vm1167, 1, 0
        %v1184 = vsel %vm1168, 1, 0
        %v1185 = vsel %vm1169, 1, 0
        %v1186 = vcvt.s32.f32 %v1170
        %v1187 = vcvt.s32.f32 %v1171
        %v1188 = vcvt.s32.f32 %v1172
        %v1189 = vcvt.s32.f32 %v1173
        %v1190 = vcvt.s32.f32 %v1174
        %v1191 = vcvt.s32.f32 %v1175
        %v1192 = vcvt.s32.f32 %v1176
        %v1193 = vcvt.s32.f32 %v1177
        %v1194 = vcvt.s32.f32 %v1178
        %v1195 = vcvt.s32.f32 %v1179
        %v1196 = vcvt.s32.f32 %v1180
        %v1197 = vcvt.s32.f32 %v1181
        %v1198 = vcvt.s32.f32 %v1182
        %v1199 = vcvt.s32.f32 %v1183
        %v1200 = vcvt.s32.f32 %v1184
        %v1201 = vcvt.s32.f32 %v1185
        %1202 = vmatprep.subr.mxu0 0.0
        %1203 = vmatpush1.msra.mxu0 %v1186
        %1204 = vmatprep.subr.mxu0 0.0
        %1205 = vmatpush1.msra.mxu0 %v1187
        %1206 = vmatprep.subr.mxu0 0.0
        %1207 = vmatpush1.msra.mxu0 %v1188
        %1208 = vmatprep.subr.mxu0 0.0
        %1209 = vmatpush1.msra.mxu0 %v1189
        %1210 = vmatprep.subr.mxu0 0.0
        %1211 = vmatpush1.msra.mxu0 %v1190
        %1212 = vmatprep.subr.mxu0 0.0
        %1213 = vmatpush1.msra.mxu0 %v1191
        %1214 = vmatprep.subr.mxu0 0.0
        %1215 = vmatpush1.msra.mxu0 %v1192
        %1216 = vmatprep.subr.mxu0 0.0
        %1217 = vmatpush1.msra.mxu0 %v1193
        %1218 = vmatprep.subr.mxu0 0.0
        %1219 = vmatpush1.msra.mxu0 %v1194
        %1220 = vmatprep.subr.mxu0 0.0
        %1221 = vmatpush1.msra.mxu0 %v1195
        %1222 = vmatprep.subr.mxu0 0.0
        %1223 = vmatpush1.msra.mxu0 %v1196
        %1224 = vmatprep.subr.mxu0 0.0
        %1225 = vmatpush1.msra.mxu0 %v1197
        %1226 = vmatprep.subr.mxu0 0.0
        %1227 = vmatpush1.msra.mxu0 %v1198
        %1228 = vmatprep.subr.mxu0 0.0
        %1229 = vmatpush1.msra.mxu0 %v1199
        %1230 = vmatprep.subr.mxu0 0.0
        %1231 = vmatpush1.msra.mxu0 %v1200
        %1232 = vmatprep.subr.mxu0 0.0
        %1233 = vmatpush1.msra.mxu0 %v1201
        %1234 = vmatprep.subr.mxu0 0.0
        %1235 = vmatpush1.msra.mxu0 0.0
        %1236 = vmatprep.subr.mxu0 0.0
        %1237 = vmatpush1.msra.mxu0 0.0
        %1238 = vmatprep.subr.mxu0 0.0
        %1239 = vmatpush1.msra.mxu0 0.0
        %1240 = vmatprep.subr.mxu0 0.0
        %1241 = vmatpush1.msra.mxu0 0.0
        %1242 = vmatprep.subr.mxu0 0.0
        %1243 = vmatpush1.msra.mxu0 0.0
        %1244 = vmatprep.subr.mxu0 0.0
        %1245 = vmatpush1.msra.mxu0 0.0
        %1246 = vmatprep.subr.mxu0 0.0
        %1247 = vmatpush1.msra.mxu0 0.0
        %1248 = vmatprep.subr.mxu0 0.0
        %1249 = vmatpush1.msra.mxu0 0.0
        %1250 = vmatprep.subr.mxu0 0.0
        %1251 = vmatpush1.msra.mxu0 0.0
        %1252 = vmatprep.subr.mxu0 0.0
        %1253 = vmatpush1.msra.mxu0 0.0
        %1254 = vmatprep.subr.mxu0 0.0
        %1255 = vmatpush1.msra.mxu0 0.0
        %1256 = vmatprep.subr.mxu0 0.0
        %1257 = vmatpush1.msra.mxu0 0.0
        %1258 = vmatprep.subr.mxu0 0.0
        %1259 = vmatpush1.msra.mxu0 0.0
        %1260 = vmatprep.subr.mxu0 0.0
        %1261 = vmatpush1.msra.mxu0 0.0
        %1262 = vmatprep.subr.mxu0 0.0
        %1263 = vmatpush1.msra.mxu0 0.0
        %1264 = vmatprep.subr.mxu0 0.0
        %1265 = vmatpush1.msra.mxu0 0.0
        %1266 = vmatprep.mubr.f32.mxu0 0.0
        %1267 = vmatmul.mubr.f32.gmra.mrb[0].mxu0 %v265
        %v1268 = vpop.f32.mrb[0].mxu0
        %v1269 = vadd.f32 %v388, %v1268
        %v1270 = vpop.f32.mrb[0].mxu0
        %1271 = vmatprep.mubr.f32.mxu0 0.0
        %1272 = vmatmul.mubr.f32.gmra.mrb[0].mxu0 %v266
        %v1273 = vpop.f32.mrb[0].mxu0
        %v1274 = vadd.f32 %v393, %v1273
        %v1275 = vpop.f32.mrb[0].mxu0
        %1276 = vmatprep.mubr.f32.mxu0 0.0
        %1277 = vmatmul.mubr.f32.gmra.mrb[0].mxu0 %v267
        %v1278 = vpop.f32.mrb[0].mxu0
        %v1279 = vadd.f32 %v398, %v1278
        %v1280 = vpop.f32.mrb[0].mxu0
        %1281 = vmatprep.mubr.f32.mxu0 0.0
        %1282 = vmatmul.mubr.f32.gmra.mrb[0].mxu0 %v268
        %v1283 = vpop.f32.mrb[0].mxu0
        %v1284 = vadd.f32 %v403, %v1283
        %v1285 = vpop.f32.mrb[0].mxu0
        %1286 = vdwg.mxu0
        %v1287 = vmax.f32 %v1269, 0.0
        %v1288 = vmax.f32 %v1274, 0.0
        %v1289 = vmax.f32 %v1279, 0.0
        %v1290 = vmax.f32 %v1284, 0.0
        %v1291 = vmul.f32 %v1287, %v497
        %v1292 = vmul.f32 %v1288, %v502
        %v1293 = vmul.f32 %v1289, %v507
        %v1294 = vmul.f32 %v1290, %v512
        %v1295 = vadd.f32 %v1291, %v1292
        %v1296 = vadd.f32 %v1295, %v1293
        %v1297 = vadd.f32 %v1296, %v1294
        %v1298 = vrot.slane %v1297, 4
        %v1299 = vadd.f32 %v1297, %v1298
        %v1300 = vrot.slane %v1299, 2
        %v1301 = vadd.f32 %v1299, %v1300
        %v1302 = vrot.slane %v1301, 1
        %v1303 = vadd.f32 %v1301, %v1302
        %v1304 = vadd.f32 %v1303, %v527
        %1305 = vst [vmem:[%s256 + $0x4] sm:$0x1] %v1304
        %v1306 = vld [vmem:[%s260 + $0x5] sm:$0x1]
        %v1307 = vld [vmem:[%s264 + $0x5] sm:$0x1]
        %v1308 = vlaneseq
        %v1309 = vshrl.u32 %v1308, 7
        %v1310 = vsub.s32 0, %v1309
        %v1311 = vrot.slane %v1306, %v1310
        %vm1312 = vcmp.eq.s32.totalorder %v279, %v1311
        %vm1313 = vcmp.eq.s32.totalorder %v280, %v1311
        %vm1314 = vcmp.eq.s32.totalorder %v281, %v1311
        %vm1315 = vcmp.eq.s32.totalorder %v282, %v1311
        %vm1316 = vcmp.eq.s32.totalorder %v283, %v1311
        %vm1317 = vcmp.eq.s32.totalorder %v284, %v1311
        %vm1318 = vcmp.eq.s32.totalorder %v285, %v1311
        %vm1319 = vcmp.eq.s32.totalorder %v286, %v1311
        %vm1320 = vcmp.eq.s32.totalorder %v287, %v1311
        %vm1321 = vcmp.eq.s32.totalorder %v288, %v1311
        %vm1322 = vcmp.eq.s32.totalorder %v289, %v1311
        %vm1323 = vcmp.eq.s32.totalorder %v290, %v1311
        %vm1324 = vcmp.eq.s32.totalorder %v291, %v1311
        %vm1325 = vcmp.eq.s32.totalorder %v292, %v1311
        %vm1326 = vcmp.eq.s32.totalorder %v293, %v1311
        %vm1327 = vcmp.eq.s32.totalorder %v294, %v1311
        %v1328 = vlaneseq
        %v1329 = vshrl.u32 %v1328, 7
        %v1330 = vsub.s32 0, %v1329
        %v1331 = vrot.slane %v1307, %v1330
        %vm1332 = vcmp.eq.s32.totalorder %v279, %v1331
        %vm1333 = vcmp.eq.s32.totalorder %v280, %v1331
        %vm1334 = vcmp.eq.s32.totalorder %v281, %v1331
        %vm1335 = vcmp.eq.s32.totalorder %v282, %v1331
        %vm1336 = vcmp.eq.s32.totalorder %v283, %v1331
        %vm1337 = vcmp.eq.s32.totalorder %v284, %v1331
        %vm1338 = vcmp.eq.s32.totalorder %v285, %v1331
        %vm1339 = vcmp.eq.s32.totalorder %v286, %v1331
        %vm1340 = vcmp.eq.s32.totalorder %v287, %v1331
        %vm1341 = vcmp.eq.s32.totalorder %v288, %v1331
        %vm1342 = vcmp.eq.s32.totalorder %v289, %v1331
        %vm1343 = vcmp.eq.s32.totalorder %v290, %v1331
        %vm1344 = vcmp.eq.s32.totalorder %v291, %v1331
        %vm1345 = vcmp.eq.s32.totalorder %v292, %v1331
        %vm1346 = vcmp.eq.s32.totalorder %v293, %v1331
        %vm1347 = vcmp.eq.s32.totalorder %v294, %v1331
        %vm1348 = vmor %vm1312, %vm1332
        %vm1349 = vmor %vm1313, %vm1333
        %vm1350 = vmor %vm1314, %vm1334
        %vm1351 = vmor %vm1315, %vm1335
        %vm1352 = vmor %vm1316, %vm1336
        %vm1353 = vmor %vm1317, %vm1337
        %vm1354 = vmor %vm1318, %vm1338
        %vm1355 = vmor %vm1319, %vm1339
        %vm1356 = vmor %vm1320, %vm1340
        %vm1357 = vmor %vm1321, %vm1341
        %vm1358 = vmor %vm1322, %vm1342
        %vm1359 = vmor %vm1323, %vm1343
        %vm1360 = vmor %vm1324, %vm1344
        %vm1361 = vmor %vm1325, %vm1345
        %vm1362 = vmor %vm1326, %vm1346
        %vm1363 = vmor %vm1327, %vm1347
        %v1364 = vsel %vm1348, 1, 0
        %v1365 = vsel %vm1349, 1, 0
        %v1366 = vsel %vm1350, 1, 0
        %v1367 = vsel %vm1351, 1, 0
        %v1368 = vsel %vm1352, 1, 0
        %v1369 = vsel %vm1353, 1, 0
        %v1370 = vsel %vm1354, 1, 0
        %v1371 = vsel %vm1355, 1, 0
        %v1372 = vsel %vm1356, 1, 0
        %v1373 = vsel %vm1357, 1, 0
        %v1374 = vsel %vm1358, 1, 0
        %v1375 = vsel %vm1359, 1, 0
        %v1376 = vsel %vm1360, 1, 0
        %v1377 = vsel %vm1361, 1, 0
        %v1378 = vsel %vm1362, 1, 0
        %v1379 = vsel %vm1363, 1, 0
        %v1380 = vcvt.s32.f32 %v1364
        %v1381 = vcvt.s32.f32 %v1365
        %v1382 = vcvt.s32.f32 %v1366
        %v1383 = vcvt.s32.f32 %v1367
        %v1384 = vcvt.s32.f32 %v1368
        %v1385 = vcvt.s32.f32 %v1369
        %v1386 = vcvt.s32.f32 %v1370
        %v1387 = vcvt.s32.f32 %v1371
        %v1388 = vcvt.s32.f32 %v1372
        %v1389 = vcvt.s32.f32 %v1373
        %v1390 = vcvt.s32.f32 %v1374
        %v1391 = vcvt.s32.f32 %v1375
        %v1392 = vcvt.s32.f32 %v1376
        %v1393 = vcvt.s32.f32 %v1377
        %v1394 = vcvt.s32.f32 %v1378
        %v1395 = vcvt.s32.f32 %v1379
        %1396 = vmatprep.subr.mxu0 0.0
        %1397 = vmatpush1.msra.mxu0 %v1380
        %1398 = vmatprep.subr.mxu0 0.0
        %1399 = vmatpush1.msra.mxu0 %v1381
        %1400 = vmatprep.subr.mxu0 0.0
        %1401 = vmatpush1.msra.mxu0 %v1382
        %1402 = vmatprep.subr.mxu0 0.0
        %1403 = vmatpush1.msra.mxu0 %v1383
        %1404 = vmatprep.subr.mxu0 0.0
        %1405 = vmatpush1.msra.mxu0 %v1384
        %1406 = vmatprep.subr.mxu0 0.0
        %1407 = vmatpush1.msra.mxu0 %v1385
        %1408 = vmatprep.subr.mxu0 0.0
        %1409 = vmatpush1.msra.mxu0 %v1386
        %1410 = vmatprep.subr.mxu0 0.0
        %1411 = vmatpush1.msra.mxu0 %v1387
        %1412 = vmatprep.subr.mxu0 0.0
        %1413 = vmatpush1.msra.mxu0 %v1388
        %1414 = vmatprep.subr.mxu0 0.0
        %1415 = vmatpush1.msra.mxu0 %v1389
        %1416 = vmatprep.subr.mxu0 0.0
        %1417 = vmatpush1.msra.mxu0 %v1390
        %1418 = vmatprep.subr.mxu0 0.0
        %1419 = vmatpush1.msra.mxu0 %v1391
        %1420 = vmatprep.subr.mxu0 0.0
        %1421 = vmatpush1.msra.mxu0 %v1392
        %1422 = vmatprep.subr.mxu0 0.0
        %1423 = vmatpush1.msra.mxu0 %v1393
        %1424 = vmatprep.subr.mxu0 0.0
        %1425 = vmatpush1.msra.mxu0 %v1394
        %1426 = vmatprep.subr.mxu0 0.0
        %1427 = vmatpush1.msra.mxu0 %v1395
        %1428 = vmatprep.subr.mxu0 0.0
        %1429 = vmatpush1.msra.mxu0 0.0
        %1430 = vmatprep.subr.mxu0 0.0
        %1431 = vmatpush1.msra.mxu0 0.0
        %1432 = vmatprep.subr.mxu0 0.0
        %1433 = vmatpush1.msra.mxu0 0.0
        %1434 = vmatprep.subr.mxu0 0.0
        %1435 = vmatpush1.msra.mxu0 0.0
        %1436 = vmatprep.subr.mxu0 0.0
        %1437 = vmatpush1.msra.mxu0 0.0
        %1438 = vmatprep.subr.mxu0 0.0
        %1439 = vmatpush1.msra.mxu0 0.0
        %1440 = vmatprep.subr.mxu0 0.0
        %1441 = vmatpush1.msra.mxu0 0.0
        %1442 = vmatprep.subr.mxu0 0.0
        %1443 = vmatpush1.msra.mxu0 0.0
        %1444 = vmatprep.subr.mxu0 0.0
        %1445 = vmatpush1.msra.mxu0 0.0
        %1446 = vmatprep.subr.mxu0 0.0
        %1447 = vmatpush1.msra.mxu0 0.0
        %1448 = vmatprep.subr.mxu0 0.0
        %1449 = vmatpush1.msra.mxu0 0.0
        %1450 = vmatprep.subr.mxu0 0.0
        %1451 = vmatpush1.msra.mxu0 0.0
        %1452 = vmatprep.subr.mxu0 0.0
        %1453 = vmatpush1.msra.mxu0 0.0
        %1454 = vmatprep.subr.mxu0 0.0
        %1455 = vmatpush1.msra.mxu0 0.0
        %1456 = vmatprep.subr.mxu0 0.0
        %1457 = vmatpush1.msra.mxu0 0.0
        %1458 = vmatprep.subr.mxu0 0.0
        %1459 = vmatpush1.msra.mxu0 0.0
        %1460 = vmatprep.mubr.f32.mxu0 0.0
        %1461 = vmatmul.mubr.f32.gmra.mrb[0].mxu0 %v265
        %v1462 = vpop.f32.mrb[0].mxu0
        %v1463 = vadd.f32 %v388, %v1462
        %v1464 = vpop.f32.mrb[0].mxu0
        %1465 = vmatprep.mubr.f32.mxu0 0.0
        %1466 = vmatmul.mubr.f32.gmra.mrb[0].mxu0 %v266
        %v1467 = vpop.f32.mrb[0].mxu0
        %v1468 = vadd.f32 %v393, %v1467
        %v1469 = vpop.f32.mrb[0].mxu0
        %1470 = vmatprep.mubr.f32.mxu0 0.0
        %1471 = vmatmul.mubr.f32.gmra.mrb[0].mxu0 %v267
        %v1472 = vpop.f32.mrb[0].mxu0
        %v1473 = vadd.f32 %v398, %v1472
        %v1474 = vpop.f32.mrb[0].mxu0
        %1475 = vmatprep.mubr.f32.mxu0 0.0
        %1476 = vmatmul.mubr.f32.gmra.mrb[0].mxu0 %v268
        %v1477 = vpop.f32.mrb[0].mxu0
        %v1478 = vadd.f32 %v403, %v1477
        %v1479 = vpop.f32.mrb[0].mxu0
        %1480 = vdwg.mxu0
        %v1481 = vmax.f32 %v1463, 0.0
        %v1482 = vmax.f32 %v1468, 0.0
        %v1483 = vmax.f32 %v1473, 0.0
        %v1484 = vmax.f32 %v1478, 0.0
        %v1485 = vmul.f32 %v1481, %v497
        %v1486 = vmul.f32 %v1482, %v502
        %v1487 = vmul.f32 %v1483, %v507
        %v1488 = vmul.f32 %v1484, %v512
        %v1489 = vadd.f32 %v1485, %v1486
        %v1490 = vadd.f32 %v1489, %v1487
        %v1491 = vadd.f32 %v1490, %v1488
        %v1492 = vrot.slane %v1491, 4
        %v1493 = vadd.f32 %v1491, %v1492
        %v1494 = vrot.slane %v1493, 2
        %v1495 = vadd.f32 %v1493, %v1494
        %v1496 = vrot.slane %v1495, 1
        %v1497 = vadd.f32 %v1495, %v1496
        %v1498 = vadd.f32 %v1497, %v527
        %1499 = vst [vmem:[%s256 + $0x5] sm:$0x1] %v1498
        %v1500 = vld [vmem:[%s260 + $0x6] sm:$0x1]
        %v1501 = vld [vmem:[%s264 + $0x6] sm:$0x1]
        %v1502 = vlaneseq
        %v1503 = vshrl.u32 %v1502, 7
        %v1504 = vsub.s32 0, %v1503
        %v1505 = vrot.slane %v1500, %v1504
        %vm1506 = vcmp.eq.s32.totalorder %v279, %v1505
        %vm1507 = vcmp.eq.s32.totalorder %v280, %v1505
        %vm1508 = vcmp.eq.s32.totalorder %v281, %v1505
        %vm1509 = vcmp.eq.s32.totalorder %v282, %v1505
        %vm1510 = vcmp.eq.s32.totalorder %v283, %v1505
        %vm1511 = vcmp.eq.s32.totalorder %v284, %v1505
        %vm1512 = vcmp.eq.s32.totalorder %v285, %v1505
        %vm1513 = vcmp.eq.s32.totalorder %v286, %v1505
        %vm1514 = vcmp.eq.s32.totalorder %v287, %v1505
        %vm1515 = vcmp.eq.s32.totalorder %v288, %v1505
        %vm1516 = vcmp.eq.s32.totalorder %v289, %v1505
        %vm1517 = vcmp.eq.s32.totalorder %v290, %v1505
        %vm1518 = vcmp.eq.s32.totalorder %v291, %v1505
        %vm1519 = vcmp.eq.s32.totalorder %v292, %v1505
        %vm1520 = vcmp.eq.s32.totalorder %v293, %v1505
        %vm1521 = vcmp.eq.s32.totalorder %v294, %v1505
        %v1522 = vlaneseq
        %v1523 = vshrl.u32 %v1522, 7
        %v1524 = vsub.s32 0, %v1523
        %v1525 = vrot.slane %v1501, %v1524
        %vm1526 = vcmp.eq.s32.totalorder %v279, %v1525
        %vm1527 = vcmp.eq.s32.totalorder %v280, %v1525
        %vm1528 = vcmp.eq.s32.totalorder %v281, %v1525
        %vm1529 = vcmp.eq.s32.totalorder %v282, %v1525
        %vm1530 = vcmp.eq.s32.totalorder %v283, %v1525
        %vm1531 = vcmp.eq.s32.totalorder %v284, %v1525
        %vm1532 = vcmp.eq.s32.totalorder %v285, %v1525
        %vm1533 = vcmp.eq.s32.totalorder %v286, %v1525
        %vm1534 = vcmp.eq.s32.totalorder %v287, %v1525
        %vm1535 = vcmp.eq.s32.totalorder %v288, %v1525
        %vm1536 = vcmp.eq.s32.totalorder %v289, %v1525
        %vm1537 = vcmp.eq.s32.totalorder %v290, %v1525
        %vm1538 = vcmp.eq.s32.totalorder %v291, %v1525
        %vm1539 = vcmp.eq.s32.totalorder %v292, %v1525
        %vm1540 = vcmp.eq.s32.totalorder %v293, %v1525
        %vm1541 = vcmp.eq.s32.totalorder %v294, %v1525
        %vm1542 = vmor %vm1506, %vm1526
        %vm1543 = vmor %vm1507, %vm1527
        %vm1544 = vmor %vm1508, %vm1528
        %vm1545 = vmor %vm1509, %vm1529
        %vm1546 = vmor %vm1510, %vm1530
        %vm1547 = vmor %vm1511, %vm1531
        %vm1548 = vmor %vm1512, %vm1532
        %vm1549 = vmor %vm1513, %vm1533
        %vm1550 = vmor %vm1514, %vm1534
        %vm1551 = vmor %vm1515, %vm1535
        %vm1552 = vmor %vm1516, %vm1536
        %vm1553 = vmor %vm1517, %vm1537
        %vm1554 = vmor %vm1518, %vm1538
        %vm1555 = vmor %vm1519, %vm1539
        %vm1556 = vmor %vm1520, %vm1540
        %vm1557 = vmor %vm1521, %vm1541
        %v1558 = vsel %vm1542, 1, 0
        %v1559 = vsel %vm1543, 1, 0
        %v1560 = vsel %vm1544, 1, 0
        %v1561 = vsel %vm1545, 1, 0
        %v1562 = vsel %vm1546, 1, 0
        %v1563 = vsel %vm1547, 1, 0
        %v1564 = vsel %vm1548, 1, 0
        %v1565 = vsel %vm1549, 1, 0
        %v1566 = vsel %vm1550, 1, 0
        %v1567 = vsel %vm1551, 1, 0
        %v1568 = vsel %vm1552, 1, 0
        %v1569 = vsel %vm1553, 1, 0
        %v1570 = vsel %vm1554, 1, 0
        %v1571 = vsel %vm1555, 1, 0
        %v1572 = vsel %vm1556, 1, 0
        %v1573 = vsel %vm1557, 1, 0
        %v1574 = vcvt.s32.f32 %v1558
        %v1575 = vcvt.s32.f32 %v1559
        %v1576 = vcvt.s32.f32 %v1560
        %v1577 = vcvt.s32.f32 %v1561
        %v1578 = vcvt.s32.f32 %v1562
        %v1579 = vcvt.s32.f32 %v1563
        %v1580 = vcvt.s32.f32 %v1564
        %v1581 = vcvt.s32.f32 %v1565
        %v1582 = vcvt.s32.f32 %v1566
        %v1583 = vcvt.s32.f32 %v1567
        %v1584 = vcvt.s32.f32 %v1568
        %v1585 = vcvt.s32.f32 %v1569
        %v1586 = vcvt.s32.f32 %v1570
        %v1587 = vcvt.s32.f32 %v1571
        %v1588 = vcvt.s32.f32 %v1572
        %v1589 = vcvt.s32.f32 %v1573
        %1590 = vmatprep.subr.mxu0 0.0
        %1591 = vmatpush1.msra.mxu0 %v1574
        %1592 = vmatprep.subr.mxu0 0.0
        %1593 = vmatpush1.msra.mxu0 %v1575
        %1594 = vmatprep.subr.mxu0 0.0
        %1595 = vmatpush1.msra.mxu0 %v1576
        %1596 = vmatprep.subr.mxu0 0.0
        %1597 = vmatpush1.msra.mxu0 %v1577
        %1598 = vmatprep.subr.mxu0 0.0
        %1599 = vmatpush1.msra.mxu0 %v1578
        %1600 = vmatprep.subr.mxu0 0.0
        %1601 = vmatpush1.msra.mxu0 %v1579
        %1602 = vmatprep.subr.mxu0 0.0
        %1603 = vmatpush1.msra.mxu0 %v1580
        %1604 = vmatprep.subr.mxu0 0.0
        %1605 = vmatpush1.msra.mxu0 %v1581
        %1606 = vmatprep.subr.mxu0 0.0
        %1607 = vmatpush1.msra.mxu0 %v1582
        %1608 = vmatprep.subr.mxu0 0.0
        %1609 = vmatpush1.msra.mxu0 %v1583
        %1610 = vmatprep.subr.mxu0 0.0
        %1611 = vmatpush1.msra.mxu0 %v1584
        %1612 = vmatprep.subr.mxu0 0.0
        %1613 = vmatpush1.msra.mxu0 %v1585
        %1614 = vmatprep.subr.mxu0 0.0
        %1615 = vmatpush1.msra.mxu0 %v1586
        %1616 = vmatprep.subr.mxu0 0.0
        %1617 = vmatpush1.msra.mxu0 %v1587
        %1618 = vmatprep.subr.mxu0 0.0
        %1619 = vmatpush1.msra.mxu0 %v1588
        %1620 = vmatprep.subr.mxu0 0.0
        %1621 = vmatpush1.msra.mxu0 %v1589
        %1622 = vmatprep.subr.mxu0 0.0
        %1623 = vmatpush1.msra.mxu0 0.0
        %1624 = vmatprep.subr.mxu0 0.0
        %1625 = vmatpush1.msra.mxu0 0.0
        %1626 = vmatprep.subr.mxu0 0.0
        %1627 = vmatpush1.msra.mxu0 0.0
        %1628 = vmatprep.subr.mxu0 0.0
        %1629 = vmatpush1.msra.mxu0 0.0
        %1630 = vmatprep.subr.mxu0 0.0
        %1631 = vmatpush1.msra.mxu0 0.0
        %1632 = vmatprep.subr.mxu0 0.0
        %1633 = vmatpush1.msra.mxu0 0.0
        %1634 = vmatprep.subr.mxu0 0.0
        %1635 = vmatpush1.msra.mxu0 0.0
        %1636 = vmatprep.subr.mxu0 0.0
        %1637 = vmatpush1.msra.mxu0 0.0
        %1638 = vmatprep.subr.mxu0 0.0
        %1639 = vmatpush1.msra.mxu0 0.0
        %1640 = vmatprep.subr.mxu0 0.0
        %1641 = vmatpush1.msra.mxu0 0.0
        %1642 = vmatprep.subr.mxu0 0.0
        %1643 = vmatpush1.msra.mxu0 0.0
        %1644 = vmatprep.subr.mxu0 0.0
        %1645 = vmatpush1.msra.mxu0 0.0
        %1646 = vmatprep.subr.mxu0 0.0
        %1647 = vmatpush1.msra.mxu0 0.0
        %1648 = vmatprep.subr.mxu0 0.0
        %1649 = vmatpush1.msra.mxu0 0.0
        %1650 = vmatprep.subr.mxu0 0.0
        %1651 = vmatpush1.msra.mxu0 0.0
        %1652 = vmatprep.subr.mxu0 0.0
        %1653 = vmatpush1.msra.mxu0 0.0
        %1654 = vmatprep.mubr.f32.mxu0 0.0
        %1655 = vmatmul.mubr.f32.gmra.mrb[0].mxu0 %v265
        %v1656 = vpop.f32.mrb[0].mxu0
        %v1657 = vadd.f32 %v388, %v1656
        %v1658 = vpop.f32.mrb[0].mxu0
        %1659 = vmatprep.mubr.f32.mxu0 0.0
        %1660 = vmatmul.mubr.f32.gmra.mrb[0].mxu0 %v266
        %v1661 = vpop.f32.mrb[0].mxu0
        %v1662 = vadd.f32 %v393, %v1661
        %v1663 = vpop.f32.mrb[0].mxu0
        %1664 = vmatprep.mubr.f32.mxu0 0.0
        %1665 = vmatmul.mubr.f32.gmra.mrb[0].mxu0 %v267
        %v1666 = vpop.f32.mrb[0].mxu0
        %v1667 = vadd.f32 %v398, %v1666
        %v1668 = vpop.f32.mrb[0].mxu0
        %1669 = vmatprep.mubr.f32.mxu0 0.0
        %1670 = vmatmul.mubr.f32.gmra.mrb[0].mxu0 %v268
        %v1671 = vpop.f32.mrb[0].mxu0
        %v1672 = vadd.f32 %v403, %v1671
        %v1673 = vpop.f32.mrb[0].mxu0
        %1674 = vdwg.mxu0
        %v1675 = vmax.f32 %v1657, 0.0
        %v1676 = vmax.f32 %v1662, 0.0
        %v1677 = vmax.f32 %v1667, 0.0
        %v1678 = vmax.f32 %v1672, 0.0
        %v1679 = vmul.f32 %v1675, %v497
        %v1680 = vmul.f32 %v1676, %v502
        %v1681 = vmul.f32 %v1677, %v507
        %v1682 = vmul.f32 %v1678, %v512
        %v1683 = vadd.f32 %v1679, %v1680
        %v1684 = vadd.f32 %v1683, %v1681
        %v1685 = vadd.f32 %v1684, %v1682
        %v1686 = vrot.slane %v1685, 4
        %v1687 = vadd.f32 %v1685, %v1686
        %v1688 = vrot.slane %v1687, 2
        %v1689 = vadd.f32 %v1687, %v1688
        %v1690 = vrot.slane %v1689, 1
        %v1691 = vadd.f32 %v1689, %v1690
        %v1692 = vadd.f32 %v1691, %v527
        %1693 = vst [vmem:[%s256 + $0x6] sm:$0x1] %v1692
        %v1694 = vld [vmem:[%s260 + $0x7] sm:$0x1]
        %v1695 = vld [vmem:[%s264 + $0x7] sm:$0x1]
        %v1696 = vlaneseq
        %v1697 = vshrl.u32 %v1696, 7
        %v1698 = vsub.s32 0, %v1697
        %v1699 = vrot.slane %v1694, %v1698
        %vm1700 = vcmp.eq.s32.totalorder %v279, %v1699
        %vm1701 = vcmp.eq.s32.totalorder %v280, %v1699
        %vm1702 = vcmp.eq.s32.totalorder %v281, %v1699
        %vm1703 = vcmp.eq.s32.totalorder %v282, %v1699
        %vm1704 = vcmp.eq.s32.totalorder %v283, %v1699
        %vm1705 = vcmp.eq.s32.totalorder %v284, %v1699
        %vm1706 = vcmp.eq.s32.totalorder %v285, %v1699
        %vm1707 = vcmp.eq.s32.totalorder %v286, %v1699
        %vm1708 = vcmp.eq.s32.totalorder %v287, %v1699
        %vm1709 = vcmp.eq.s32.totalorder %v288, %v1699
        %vm1710 = vcmp.eq.s32.totalorder %v289, %v1699
        %vm1711 = vcmp.eq.s32.totalorder %v290, %v1699
        %vm1712 = vcmp.eq.s32.totalorder %v291, %v1699
        %vm1713 = vcmp.eq.s32.totalorder %v292, %v1699
        %vm1714 = vcmp.eq.s32.totalorder %v293, %v1699
        %vm1715 = vcmp.eq.s32.totalorder %v294, %v1699
        %v1716 = vlaneseq
        %v1717 = vshrl.u32 %v1716, 7
        %v1718 = vsub.s32 0, %v1717
        %v1719 = vrot.slane %v1695, %v1718
        %vm1720 = vcmp.eq.s32.totalorder %v279, %v1719
        %vm1721 = vcmp.eq.s32.totalorder %v280, %v1719
        %vm1722 = vcmp.eq.s32.totalorder %v281, %v1719
        %vm1723 = vcmp.eq.s32.totalorder %v282, %v1719
        %vm1724 = vcmp.eq.s32.totalorder %v283, %v1719
        %vm1725 = vcmp.eq.s32.totalorder %v284, %v1719
        %vm1726 = vcmp.eq.s32.totalorder %v285, %v1719
        %vm1727 = vcmp.eq.s32.totalorder %v286, %v1719
        %vm1728 = vcmp.eq.s32.totalorder %v287, %v1719
        %vm1729 = vcmp.eq.s32.totalorder %v288, %v1719
        %vm1730 = vcmp.eq.s32.totalorder %v289, %v1719
        %vm1731 = vcmp.eq.s32.totalorder %v290, %v1719
        %vm1732 = vcmp.eq.s32.totalorder %v291, %v1719
        %vm1733 = vcmp.eq.s32.totalorder %v292, %v1719
        %vm1734 = vcmp.eq.s32.totalorder %v293, %v1719
        %vm1735 = vcmp.eq.s32.totalorder %v294, %v1719
        %vm1736 = vmor %vm1700, %vm1720
        %vm1737 = vmor %vm1701, %vm1721
        %vm1738 = vmor %vm1702, %vm1722
        %vm1739 = vmor %vm1703, %vm1723
        %vm1740 = vmor %vm1704, %vm1724
        %vm1741 = vmor %vm1705, %vm1725
        %vm1742 = vmor %vm1706, %vm1726
        %vm1743 = vmor %vm1707, %vm1727
        %vm1744 = vmor %vm1708, %vm1728
        %vm1745 = vmor %vm1709, %vm1729
        %vm1746 = vmor %vm1710, %vm1730
        %vm1747 = vmor %vm1711, %vm1731
        %vm1748 = vmor %vm1712, %vm1732
        %vm1749 = vmor %vm1713, %vm1733
        %vm1750 = vmor %vm1714, %vm1734
        %vm1751 = vmor %vm1715, %vm1735
        %v1752 = vsel %vm1736, 1, 0
        %v1753 = vsel %vm1737, 1, 0
        %v1754 = vsel %vm1738, 1, 0
        %v1755 = vsel %vm1739, 1, 0
        %v1756 = vsel %vm1740, 1, 0
        %v1757 = vsel %vm1741, 1, 0
        %v1758 = vsel %vm1742, 1, 0
        %v1759 = vsel %vm1743, 1, 0
        %v1760 = vsel %vm1744, 1, 0
        %v1761 = vsel %vm1745, 1, 0
        %v1762 = vsel %vm1746, 1, 0
        %v1763 = vsel %vm1747, 1, 0
        %v1764 = vsel %vm1748, 1, 0
        %v1765 = vsel %vm1749, 1, 0
        %v1766 = vsel %vm1750, 1, 0
        %v1767 = vsel %vm1751, 1, 0
        %v1768 = vcvt.s32.f32 %v1752
        %v1769 = vcvt.s32.f32 %v1753
        %v1770 = vcvt.s32.f32 %v1754
        %v1771 = vcvt.s32.f32 %v1755
        %v1772 = vcvt.s32.f32 %v1756
        %v1773 = vcvt.s32.f32 %v1757
        %v1774 = vcvt.s32.f32 %v1758
        %v1775 = vcvt.s32.f32 %v1759
        %v1776 = vcvt.s32.f32 %v1760
        %v1777 = vcvt.s32.f32 %v1761
        %v1778 = vcvt.s32.f32 %v1762
        %v1779 = vcvt.s32.f32 %v1763
        %v1780 = vcvt.s32.f32 %v1764
        %v1781 = vcvt.s32.f32 %v1765
        %v1782 = vcvt.s32.f32 %v1766
        %v1783 = vcvt.s32.f32 %v1767
        %1784 = vmatprep.subr.mxu0 0.0
        %1785 = vmatpush1.msra.mxu0 %v1768
        %1786 = vmatprep.subr.mxu0 0.0
        %1787 = vmatpush1.msra.mxu0 %v1769
        %1788 = vmatprep.subr.mxu0 0.0
        %1789 = vmatpush1.msra.mxu0 %v1770
        %1790 = vmatprep.subr.mxu0 0.0
        %1791 = vmatpush1.msra.mxu0 %v1771
        %1792 = vmatprep.subr.mxu0 0.0
        %1793 = vmatpush1.msra.mxu0 %v1772
        %1794 = vmatprep.subr.mxu0 0.0
        %1795 = vmatpush1.msra.mxu0 %v1773
        %1796 = vmatprep.subr.mxu0 0.0
        %1797 = vmatpush1.msra.mxu0 %v1774
        %1798 = vmatprep.subr.mxu0 0.0
        %1799 = vmatpush1.msra.mxu0 %v1775
        %1800 = vmatprep.subr.mxu0 0.0
        %1801 = vmatpush1.msra.mxu0 %v1776
        %1802 = vmatprep.subr.mxu0 0.0
        %1803 = vmatpush1.msra.mxu0 %v1777
        %1804 = vmatprep.subr.mxu0 0.0
        %1805 = vmatpush1.msra.mxu0 %v1778
        %1806 = vmatprep.subr.mxu0 0.0
        %1807 = vmatpush1.msra.mxu0 %v1779
        %1808 = vmatprep.subr.mxu0 0.0
        %1809 = vmatpush1.msra.mxu0 %v1780
        %1810 = vmatprep.subr.mxu0 0.0
        %1811 = vmatpush1.msra.mxu0 %v1781
        %1812 = vmatprep.subr.mxu0 0.0
        %1813 = vmatpush1.msra.mxu0 %v1782
        %1814 = vmatprep.subr.mxu0 0.0
        %1815 = vmatpush1.msra.mxu0 %v1783
        %1816 = vmatprep.subr.mxu0 0.0
        %1817 = vmatpush1.msra.mxu0 0.0
        %1818 = vmatprep.subr.mxu0 0.0
        %1819 = vmatpush1.msra.mxu0 0.0
        %1820 = vmatprep.subr.mxu0 0.0
        %1821 = vmatpush1.msra.mxu0 0.0
        %1822 = vmatprep.subr.mxu0 0.0
        %1823 = vmatpush1.msra.mxu0 0.0
        %1824 = vmatprep.subr.mxu0 0.0
        %1825 = vmatpush1.msra.mxu0 0.0
        %1826 = vmatprep.subr.mxu0 0.0
        %1827 = vmatpush1.msra.mxu0 0.0
        %1828 = vmatprep.subr.mxu0 0.0
        %1829 = vmatpush1.msra.mxu0 0.0
        %1830 = vmatprep.subr.mxu0 0.0
        %1831 = vmatpush1.msra.mxu0 0.0
        %1832 = vmatprep.subr.mxu0 0.0
        %1833 = vmatpush1.msra.mxu0 0.0
        %1834 = vmatprep.subr.mxu0 0.0
        %1835 = vmatpush1.msra.mxu0 0.0
        %1836 = vmatprep.subr.mxu0 0.0
        %1837 = vmatpush1.msra.mxu0 0.0
        %1838 = vmatprep.subr.mxu0 0.0
        %1839 = vmatpush1.msra.mxu0 0.0
        %1840 = vmatprep.subr.mxu0 0.0
        %1841 = vmatpush1.msra.mxu0 0.0
        %1842 = vmatprep.subr.mxu0 0.0
        %1843 = vmatpush1.msra.mxu0 0.0
        %1844 = vmatprep.subr.mxu0 0.0
        %1845 = vmatpush1.msra.mxu0 0.0
        %1846 = vmatprep.subr.mxu0 0.0
        %1847 = vmatpush1.msra.mxu0 0.0
        %1848 = vmatprep.mubr.f32.mxu0 0.0
        %1849 = vmatmul.mubr.f32.gmra.mrb[0].mxu0 %v265
        %v1850 = vpop.f32.mrb[0].mxu0
        %v1851 = vadd.f32 %v388, %v1850
        %v1852 = vpop.f32.mrb[0].mxu0
        %1853 = vmatprep.mubr.f32.mxu0 0.0
        %1854 = vmatmul.mubr.f32.gmra.mrb[0].mxu0 %v266
        %v1855 = vpop.f32.mrb[0].mxu0
        %v1856 = vadd.f32 %v393, %v1855
        %v1857 = vpop.f32.mrb[0].mxu0
        %1858 = vmatprep.mubr.f32.mxu0 0.0
        %1859 = vmatmul.mubr.f32.gmra.mrb[0].mxu0 %v267
        %v1860 = vpop.f32.mrb[0].mxu0
        %v1861 = vadd.f32 %v398, %v1860
        %v1862 = vpop.f32.mrb[0].mxu0
        %1863 = vmatprep.mubr.f32.mxu0 0.0
        %1864 = vmatmul.mubr.f32.gmra.mrb[0].mxu0 %v268
        %v1865 = vpop.f32.mrb[0].mxu0
        %v1866 = vadd.f32 %v403, %v1865
        %v1867 = vpop.f32.mrb[0].mxu0
        %1868 = vdwg.mxu0
        %v1869 = vmax.f32 %v1851, 0.0
        %v1870 = vmax.f32 %v1856, 0.0
        %v1871 = vmax.f32 %v1861, 0.0
        %v1872 = vmax.f32 %v1866, 0.0
        %v1873 = vmul.f32 %v1869, %v497
        %v1874 = vmul.f32 %v1870, %v502
        %v1875 = vmul.f32 %v1871, %v507
        %v1876 = vmul.f32 %v1872, %v512
        %v1877 = vadd.f32 %v1873, %v1874
        %v1878 = vadd.f32 %v1877, %v1875
        %v1879 = vadd.f32 %v1878, %v1876
        %v1880 = vrot.slane %v1879, 4
        %v1881 = vadd.f32 %v1879, %v1880
        %v1882 = vrot.slane %v1881, 2
        %v1883 = vadd.f32 %v1881, %v1882
        %v1884 = vrot.slane %v1883, 1
        %v1885 = vadd.f32 %v1883, %v1884
        %v1886 = vadd.f32 %v1885, %v527
        %1887 = vst [vmem:[%s256 + $0x7] sm:$0x1] %v1886
        %s1888 = sand.u32 %s165, 1
        %s1889 = scalar_lea.sflag [#allocation4], %s1888
        %s1890 = sand.u32 %s165, 1
        %s1891 = smul.addr %s1890, 8
        %s1892 = scalar_lea.vmem [#allocation3], %s1891
        // Predicated region
        $region45: #{tpu_custom_call.1} parent=43 // pred_check
          %p1893 = pneg %p175
        $region46: #{tpu_custom_call.1} parent=43 // pred_check_branch
          %1895 = sbr.rel (%p1893) target = $region48
        $region47: #{tpu_custom_call.1} parent=43 // pred_region
          %s1897 = ssub.s32 128, 128
          %1898 = vsyncadd %s1889, %s1897
          %s1899 = smul.addr %s21, 128
          %s1900 = scalar_lea.hbm %s6, %s1899
          %s1902 = sshll.u32 %s1892, 4
          %s1903 = int_to_ptr.vmem [resolvable:$true] %s1902
          %1905 = dma.vmem_to_hbm [thread:$0]  %s1903, 128, %s1900, %s1889
        $region48: #{tpu_custom_call.1} parent=43 // pred_fallthru
          _
      $region44: #{tpu_custom_call.1} parent=5 // pred_fallthru
        _
      %p1906 = scmp.le.s32.totalorder 2, %s16
      // Predicated region
      $region49: #{tpu_custom_call.1} parent=5 // pred_check
        %p1907 = pneg %p1906
      $region50: #{tpu_custom_call.1} parent=5 // pred_check_branch
        %1909 = sbr.rel (%p1907) target = $region52
      $region51: #{tpu_custom_call.1} parent=5 // pred_region
        %s1910 = ssub.s32 %s16, 2
        // Predicated region
        $region53: #{tpu_custom_call.1} parent=51 // pred_check
          %p1911 = pneg %p181
        $region54: #{tpu_custom_call.1} parent=51 // pred_check_branch
          %1913 = sbr.rel (%p1911) target = $region56
        $region55: #{tpu_custom_call.1} parent=51 // pred_region
          %s1914 = sand.u32 %s166, 1
          %s1915 = scalar_lea.sflag [#allocation4], %s1914
          %s1916 = sand.u32 %s166, 1
          %s1917 = smul.addr %s1916, 8
          %s1918 = scalar_lea.vmem [#allocation3], %s1917
          %1919 = dma.done %s1915, 128
        $region56: #{tpu_custom_call.1} parent=51 // pred_fallthru
          _
      $region52: #{tpu_custom_call.1} parent=5 // pred_fallthru
        _
    $region6: #{tpu_custom_call.1} parent=1 // loop_footer
      %s20 = sadd.s32 1, %s16
    $region7: #{tpu_custom_call.1} parent=1 // loop_footer_branch
      %15 = sbr.rel target = $region3
    $region8: #{tpu_custom_call.1} parent=1 // loop_exit
      _
    %1920 = vsyncpa [#allocation4], 1
    %s1921 = scalar_lea.sflag [#allocation4], 1
    %1922 = vsyncpa %s1921, 1

</llo_original>
